<compile_context>
chip_gen: v6e
topology: v6e:2x2x1
jax: 0.10.0
libtpu: 0.0.40
codegen_flags: <defaults>
</compile_context>

<pallas_src>
import functools

import jax
import jax.numpy as jnp
from jax import lax
from jax.experimental import pallas as pl
from jax.experimental.pallas import tpu as pltpu


def _round_up(a, b):
    return (a + b - 1) // b * b


def _brier_kernel(p_ref, w_ref, y_ref, out_ref, acc_ref, *,
                  n_valid_rows, tile_rows, chunk_rows, blocks_per_slice,
                  group, n_members, n_classes, mask_tail):
    """One grid step: `tile_rows` packed rows (group*tile_rows instances)
    accumulated into a lane-dense scratch; scalar written once per slice."""
    G, M, K = group, n_members, n_classes
    MK = M * K
    L = G * MK                       # packed lane width of the p block
    Lp = L - (M - 1) * K             # width after the member-shift reduction

    p_slice = pl.program_id(0)       # "parallel" axis (per-core slice)
    j = pl.program_id(1)             # "arbitrary" axis (accumulation)

    GMp = w_ref.shape[1]             # padded G*M (matmul contraction dim)
    Gp = y_ref.shape[1]              # padded G

    # ---- loop-invariant constants (hoisted out of the chunk loop) ----------
    # w_full = w @ e_w broadcasts each per-member weight across its K class
    # lanes; y_full = y @ e_y broadcasts each label across its instance's
    # M*K-lane group.  Tiny 0/1 matrices; MXU is otherwise idle.
    cw = lax.broadcasted_iota(jnp.int32, (GMp, L), 1)
    rw = lax.broadcasted_iota(jnp.int32, (GMp, L), 0) * K
    e_w = jnp.logical_and(cw >= rw, cw < rw + K).astype(jnp.float32)

    cy = lax.broadcasted_iota(jnp.int32, (Gp, Lp), 1)
    ry = lax.broadcasted_iota(jnp.int32, (Gp, Lp), 0) * MK
    e_y = jnp.logical_and(cy >= ry, cy < ry + MK).astype(jnp.float32)

    # Within-group class position of every lane (division-free build).
    pos = jnp.tile(lax.broadcasted_iota(jnp.int32, (1, MK), 1), (1, G))[:, :Lp]
    pos_f = pos.astype(jnp.float32)
    lane_valid = pos < K                          # m == 0 lanes hold p_bar

    if mask_tail:
        row_iota = lax.broadcasted_iota(jnp.int32, (chunk_rows, 1), 0)
        block_base = (p_slice * blocks_per_slice + j) * tile_rows

    @pl.when(j == 0)
    def _():
        acc_ref[...] = jnp.zeros_like(acc_ref)

    # ---- per-chunk compute: bounds the live working set ---------------------
    def body(c, carry):
        r0 = pl.multiple_of(c * chunk_rows, chunk_rows)
        x = p_ref[pl.ds(r0, chunk_rows), :].astype(jnp.float32)    # (chunk, L)
        w = w_ref[pl.ds(r0, chunk_rows), :].astype(jnp.float32)    # (chunk, GMp)
        yv = y_ref[pl.ds(r0, chunk_rows), :]                       # (chunk, Gp) f32

        w_full = jnp.dot(w, e_w, preferred_element_type=jnp.float32)   # (chunk, L)
        y_full = jnp.dot(yv, e_y, preferred_element_type=jnp.float32)  # (chunk, Lp)

        xw = x * w_full
        # Segmented sum over members: afterwards, lanes with pos < K hold
        # p_bar for their (instance, class).
        summed = xw[:, :Lp]
        for m in range(1, M):
            summed = summed + xw[:, m * K:m * K + Lp]

        is_target = jnp.abs(pos_f - y_full) < 0.5     # one-hot position
        diff = jnp.where(is_target, summed - 1.0, summed)
        sq = diff * diff

        if mask_tail:
            row_ok = (block_base + r0 + row_iota) < n_valid_rows   # (chunk,1)
            keep = jnp.logical_and(lane_valid, row_ok)
            contrib = jnp.where(keep, sq, 0.0)
        elif M > 1:
            contrib = jnp.where(lane_valid, sq, 0.0)
        else:
            contrib = sq
        acc_ref[...] += contrib
        return carry

    lax.fori_loop(0, tile_rows // chunk_rows, body, 0, unroll=False)

    # Horizontal reduce + (sub-lane) scalar store only once per slice.
    @pl.when(j == blocks_per_slice - 1)
    def _():
        out_ref[...] = jnp.reshape(jnp.sum(acc_ref[...]), (1, 1, 1))


def brier_loss(p_preds: jax.Array, weights_l: jax.Array, y: jax.Array,
               *, max_tile_rows: int | None = None,
               vmem_limit_bytes: int | None = None) -> jax.Array:
    """Pallas implementation of BrierLoss.forward.

    p_preds:   (N, M, K) float — per-member class probabilities
    weights_l: (N, M)    float — per-instance ensemble weights
    y:         (N,)      int   — class labels
    returns:   scalar float32
    """
    N, M, K = p_preds.shape
    assert weights_l.shape == (N, M)
    assert y.shape == (N,)

    # ---- instance packing along lanes ---------------------------------------
    g_ideal = max(1, 128 // (M * K))
    g_ideal = min(g_ideal, N)
    G = 1
    for g in range(g_ideal, 0, -1):          # largest packing that divides N
        if N % g == 0:
            G = g
            break
    R = N // G                               # packed rows
    L = G * M * K
    Lp = L - (M - 1) * K

    # Free contiguous reshapes; inputs stay in their native dtype.
    p2 = p_preds.reshape(R, L)
    GMp = _round_up(G * M, 8)
    Gp = _round_up(G, 8)
    w2 = weights_l.reshape(R, G * M)
    if GMp != G * M:
        w2 = jnp.pad(w2, ((0, 0), (0, GMp - G * M)))
    y2 = y.reshape(R, G).astype(jnp.float32)
    if Gp != G:
        y2 = jnp.pad(y2, ((0, 0), (0, Gp - G)))

    # ---- tile sizing from a per-generation VMEM budget ----------------------
    chunk = 128
    try:
        vmem_cap = int(pltpu.get_tpu_info().vmem_capacity_bytes)
    except Exception:
        vmem_cap = 64 * 1024 * 1024
    if vmem_limit_bytes is None:
        # v5e/v6e (128 MiB): 64 MiB; v7x (64 MiB): 32 MiB.
        vmem_limit_bytes = min(vmem_cap // 2, 96 * 1024 * 1024)
    # Double-buffered input blocks with lane dims padded to 128 in VMEM; keep
    # headroom for the (chunk, Lp) accumulator + per-chunk temporaries.
    padded_row_bytes = (_round_up(L, 128) * p2.dtype.itemsize
                        + _round_up(GMp, 128) * w2.dtype.itemsize
                        + _round_up(Gp, 128) * 4)
    budget = max(vmem_limit_bytes - 6 * 1024 * 1024, 2 * 1024 * 1024)
    tile = budget // (2 * padded_row_bytes)
    tile = max(chunk, tile // chunk * chunk)
    tile = min(tile, 32768, _round_up(R, chunk))
    if max_tile_rows is not None:
        tile = min(tile, max(chunk, max_tile_rows // chunk * chunk))

    nb = -(-R // tile)                        # blocks of packed rows
    P = 2 if nb >= 2 else 1                   # unconditional 2-way split (v7x)
    J = -(-nb // P)
    mask_tail = (P * J * tile != R)
    last_block = nb - 1

    def in_map(pi, ji):
        b = jnp.minimum(pi * J + ji, last_block)   # clamp phantom blocks
        return (b, 0)

    kernel = functools.partial(
        _brier_kernel, n_valid_rows=R, tile_rows=tile, chunk_rows=chunk,
        blocks_per_slice=J, group=G, n_members=M, n_classes=K,
        mask_tail=mask_tail)

    bytes_accessed = (p_preds.size * p_preds.dtype.itemsize
                      + w2.size * w2.dtype.itemsize + y2.size * 4 + P * 4)
    cost = pl.CostEstimate(flops=int(N * (2 * M * K + 4 * K)),
                           transcendentals=0,
                           bytes_accessed=int(bytes_accessed))

    out = pl.pallas_call(
        kernel,
        out_shape=jax.ShapeDtypeStruct((P, 1, 1), jnp.float32),
        grid_spec=pltpu.PrefetchScalarGridSpec(
            num_scalar_prefetch=0,
            grid=(P, J),
            in_specs=[
                pl.BlockSpec((tile, L), in_map),
                pl.BlockSpec((tile, GMp), in_map),
                pl.BlockSpec((tile, Gp), in_map),
            ],
            out_specs=pl.BlockSpec((1, 1, 1), lambda pi, ji: (pi, 0, 0)),
            scratch_shapes=[pltpu.VMEM((chunk, Lp), jnp.float32)],
        ),
        compiler_params=pltpu.CompilerParams(
            dimension_semantics=("parallel", "arbitrary"),
            vmem_limit_bytes=int(vmem_limit_bytes),
        ),
        cost_estimate=cost,
    )(p2, w2, y2)

    # Mean over all N instances, applied once.
    return jnp.sum(out) / N


def brier_loss_ref(p_preds, weights_l, y):
    """Pure-JAX reference mirroring the PyTorch module."""
    p_bar = jnp.sum(weights_l[:, :, None] * p_preds, axis=1)      # (N, K)
    y_onehot = jnp.eye(p_bar.shape[1], dtype=p_bar.dtype)[y, :]   # (N, K)
    return jnp.mean(jnp.sum((p_bar - y_onehot) ** 2, axis=1))


if __name__ == "__main__":
    def run_case(case_id, N, M, K, max_tile_rows=None):
        key = jax.random.fold_in(jax.random.PRNGKey(0), case_id)
        k1, k2, k3 = jax.random.split(key, 3)
        p = jax.nn.softmax(jax.random.normal(k1, (N, M, K), jnp.float32), axis=-1)
        w = jax.nn.softmax(jax.random.normal(k2, (N, M), jnp.float32), axis=-1)
        yy = jax.random.randint(k3, (N,), 0, K, dtype=jnp.int32)
        out = jax.block_until_ready(brier_loss(p, w, yy, max_tile_rows=max_tile_rows))
        ref = jax.block_until_ready(brier_loss_ref(p, w, yy))
        assert jnp.allclose(out, ref, atol=1e-4, rtol=1e-4), (N, M, K, out, ref)
        return out

    # Case 1: M*K = 32 -> 4 instances packed per 128 lanes.  Tile forced small
    # so the 2-slice parallel axis, an odd block count (phantom block via the
    # clamped index_map) and the tail row mask are all exercised.
    run_case(1, 1040, 4, 8, max_tile_rows=128)
    # Case 2: odd M*K (= 15) -> G = 8, L = 120; default (large) tile, single
    # partial block.
    run_case(2, 256, 3, 5)

    print("KERNEL_OK")
</pallas_src>

<mosaic_0001>
module attributes {stable_mosaic.version = 11 : i64} {
  func.func @_brier_kernel(%arg0: i32, %arg1: i32, %arg2: memref<128x128xf32, #tpu.memory_space<vmem>>, %arg3: memref<128x16xf32, #tpu.memory_space<vmem>>, %arg4: memref<128x8xf32, #tpu.memory_space<vmem>>, %arg5: memref<1x1x1xf32, #tpu.memory_space<vmem>>, %arg6: memref<128x104xf32, #tpu.memory_space<vmem>>) attributes {dimension_semantics = [#tpu.dimension_semantics<parallel>, #tpu.dimension_semantics<arbitrary>], iteration_bounds = array<i64: 2, 2>, scalar_prefetch = 0 : i64, scratch_operands = 1 : i64, tpu.core_type = #tpu.core_type<tc>, window_params = [{transform_indices = @transform_0, window_bounds = array<i64: 128, 128>}, {transform_indices = @transform_1, window_bounds = array<i64: 128, 16>}, {transform_indices = @transform_2, window_bounds = array<i64: 128, 8>}, {transform_indices = @transform_3, window_bounds = array<i64: 1, 1, 1>}]} {
    %0 = tpu.iota {dimensions = array<i32: 1>} : vector<16x128xi32>
    %1 = tpu.iota {dimensions = array<i32: 0>} : vector<16x128xi32>
    %c8_i32 = arith.constant 8 : i32
    %2 = vector.broadcast %c8_i32 : i32 to vector<16x128xi32>
    %3 = arith.muli %1, %2 : vector<16x128xi32>
    %4 = arith.cmpi sge, %0, %3 : vector<16x128xi32>
    %c8_i32_0 = arith.constant 8 : i32
    %5 = vector.broadcast %c8_i32_0 : i32 to vector<16x128xi32>
    %6 = arith.addi %3, %5 : vector<16x128xi32>
    %7 = arith.cmpi slt, %0, %6 : vector<16x128xi32>
    %8 = arith.andi %4, %7 : vector<16x128xi1>
    %9 = arith.extui %8 : vector<16x128xi1> to vector<16x128xi32>
    %10 = arith.sitofp %9 : vector<16x128xi32> to vector<16x128xf32>
    %11 = tpu.iota {dimensions = array<i32: 1>} : vector<8x104xi32>
    %12 = tpu.iota {dimensions = array<i32: 0>} : vector<8x104xi32>
    %c32_i32 = arith.constant 32 : i32
    %13 = vector.broadcast %c32_i32 : i32 to vector<8x104xi32>
    %14 = arith.muli %12, %13 : vector<8x104xi32>
    %15 = arith.cmpi sge, %11, %14 : vector<8x104xi32>
    %c32_i32_1 = arith.constant 32 : i32
    %16 = vector.broadcast %c32_i32_1 : i32 to vector<8x104xi32>
    %17 = arith.addi %14, %16 : vector<8x104xi32>
    %18 = arith.cmpi slt, %11, %17 : vector<8x104xi32>
    %19 = arith.andi %15, %18 : vector<8x104xi1>
    %20 = arith.extui %19 : vector<8x104xi1> to vector<8x104xi32>
    %21 = arith.sitofp %20 : vector<8x104xi32> to vector<8x104xf32>
    %22 = tpu.iota {dimensions = array<i32: 1>} : vector<1x32xi32>
    %23 = tpu.concatenate %22, %22, %22, %22 in 1 : vector<1x32xi32>, vector<1x32xi32>, vector<1x32xi32>, vector<1x32xi32> -> vector<1x128xi32>
    %24 = vector.extract_strided_slice %23 {offsets = [0, 0], sizes = [1, 104], strides = [1, 1]} : vector<1x128xi32> to vector<1x104xi32>
    %25 = arith.sitofp %24 : vector<1x104xi32> to vector<1x104xf32>
    %c8_i32_2 = arith.constant 8 : i32
    %26 = vector.broadcast %c8_i32_2 : i32 to vector<1x104xi32>
    %27 = arith.cmpi slt, %24, %26 : vector<1x104xi32>
    %28 = tpu.iota {dimensions = array<i32: 0>} : vector<128x1xi32>
    %c2_i32 = arith.constant 2 : i32
    %29 = arith.muli %arg0, %c2_i32 : i32
    %30 = arith.addi %29, %arg1 : i32
    %c128_i32 = arith.constant 128 : i32
    %31 = arith.muli %30, %c128_i32 : i32
    %c0_i32 = arith.constant 0 : i32
    %32 = arith.cmpi eq, %arg1, %c0_i32 : i32
    %33 = arith.extui %32 : i1 to i32
    %c0_i32_3 = arith.constant 0 : i32
    %34 = arith.cmpi ne, %33, %c0_i32_3 : i32
    scf.if %34 {
      %cst_18 = arith.constant 0.000000e+00 : f32
      %78 = vector.broadcast %cst_18 : f32 to vector<128x104xf32>
      %c0_19 = arith.constant 0 : index
      %c0_20 = arith.constant 0 : index
      %79 = vector.load %arg6[%c0_19, %c0_20] : memref<128x104xf32, #tpu.memory_space<vmem>>, vector<128x104xf32>
      tpu.vector_store %arg6[%c0_19, %c0_20], %78 {strides = array<i32>} : memref<128x104xf32, #tpu.memory_space<vmem>>, vector<128x104xf32>,
    } else {
    }
    %c0_i32_4 = arith.constant 0 : i32
    %c128_i32_5 = arith.constant 128 : i32
    %35 = arith.muli %c0_i32_4, %c128_i32_5 : i32
    %36 = tpu.assume_multiple %35, 128 : i32
    %37 = arith.index_cast %36 : i32 to index
    %c0 = arith.constant 0 : index
    %38 = vector.load %arg2[%37, %c0] : memref<128x128xf32, #tpu.memory_space<vmem>>, vector<128x128xf32>
    %39 = arith.index_cast %36 : i32 to index
    %c0_6 = arith.constant 0 : index
    %40 = vector.load %arg3[%39, %c0_6] : memref<128x16xf32, #tpu.memory_space<vmem>>, vector<128x16xf32>
    %41 = arith.index_cast %36 : i32 to index
    %c0_7 = arith.constant 0 : index
    %42 = vector.load %arg4[%41, %c0_7] : memref<128x8xf32, #tpu.memory_space<vmem>>, vector<128x8xf32>
    %cst = arith.constant dense<0.000000e+00> : vector<128x128xf32>
    %43 = tpu.matmul %40, %10, %cst {dimension_numbers = #tpu.dot_dimension_numbers<[1], [0], [0], [1], [0, 0, 1, 1], [], []>} : vector<128x16xf32>, vector<16x128xf32>, vector<128x128xf32> -> vector<128x128xf32>
    %cst_8 = arith.constant dense<0.000000e+00> : vector<128x104xf32>
    %44 = tpu.matmul %42, %21, %cst_8 {dimension_numbers = #tpu.dot_dimension_numbers<[1], [0], [0], [1], [0, 0, 1, 1], [], []>} : vector<128x8xf32>, vector<8x104xf32>, vector<128x104xf32> -> vector<128x104xf32>
    %45 = arith.mulf %38, %43 : vector<128x128xf32>
    %46 = vector.extract_strided_slice %45 {offsets = [0, 0], sizes = [128, 104], strides = [1, 1]} : vector<128x128xf32> to vector<128x104xf32>
    %47 = vector.extract_strided_slice %45 {offsets = [0, 8], sizes = [128, 104], strides = [1, 1]} : vector<128x128xf32> to vector<128x104xf32>
    %48 = arith.addf %46, %47 : vector<128x104xf32>
    %49 = vector.extract_strided_slice %45 {offsets = [0, 16], sizes = [128, 104], strides = [1, 1]} : vector<128x128xf32> to vector<128x104xf32>
    %50 = arith.addf %48, %49 : vector<128x104xf32>
    %51 = vector.extract_strided_slice %45 {offsets = [0, 24], sizes = [128, 104], strides = [1, 1]} : vector<128x128xf32> to vector<128x104xf32>
    %52 = arith.addf %50, %51 : vector<128x104xf32>
    %53 = vector.broadcast %25 : vector<1x104xf32> to vector<128x104xf32>
    %54 = arith.subf %53, %44 : vector<128x104xf32>
    %55 = math.absf %54 : vector<128x104xf32>
    %cst_9 = arith.constant 5.000000e-01 : f32
    %56 = vector.broadcast %cst_9 : f32 to vector<128x104xf32>
    %57 = arith.cmpf olt, %55, %56 : vector<128x104xf32>
    %cst_10 = arith.constant 1.000000e+00 : f32
    %58 = vector.broadcast %cst_10 : f32 to vector<128x104xf32>
    %59 = arith.subf %52, %58 : vector<128x104xf32>
    %60 = arith.select %57, %59, %52 : vector<128x104xi1>, vector<128x104xf32>
    %61 = arith.mulf %60, %60 : vector<128x104xf32>
    %62 = arith.addi %31, %36 : i32
    %63 = vector.broadcast %62 : i32 to vector<128x1xi32>
    %64 = arith.addi %63, %28 : vector<128x1xi32>
    %c260_i32 = arith.constant 260 : i32
    %65 = vector.broadcast %c260_i32 : i32 to vector<128x1xi32>
    %66 = arith.cmpi slt, %64, %65 : vector<128x1xi32>
    %67 = vector.broadcast %27 : vector<1x104xi1> to vector<128x104xi1>
    %68 = vector.broadcast %66 : vector<128x1xi1> to vector<128x104xi1>
    %69 = arith.andi %67, %68 : vector<128x104xi1>
    %cst_11 = arith.constant 0.000000e+00 : f32
    %70 = vector.broadcast %cst_11 : f32 to vector<128x104xf32>
    %71 = arith.select %69, %61, %70 : vector<128x104xi1>, vector<128x104xf32>
    %c0_12 = arith.constant 0 : index
    %c0_13 = arith.constant 0 : index
    %72 = vector.load %arg6[%c0_12, %c0_13] : memref<128x104xf32, #tpu.memory_space<vmem>>, vector<128x104xf32>
    %73 = arith.addf %72, %71 : vector<128x104xf32>
    %c0_14 = arith.constant 0 : index
    %c0_15 = arith.constant 0 : index
    %74 = vector.load %arg6[%c0_14, %c0_15] : memref<128x104xf32, #tpu.memory_space<vmem>>, vector<128x104xf32>
    tpu.vector_store %arg6[%c0_14, %c0_15], %73 {strides = array<i32>} : memref<128x104xf32, #tpu.memory_space<vmem>>, vector<128x104xf32>,
    %c1_i32 = arith.constant 1 : i32
    %c1_i32_16 = arith.constant 1 : i32
    %75 = arith.cmpi eq, %arg1, %c1_i32_16 : i32
    %76 = arith.extui %75 : i1 to i32
    %c0_i32_17 = arith.constant 0 : i32
    %77 = arith.cmpi ne, %76, %c0_i32_17 : i32
    scf.if %77 {
      %c0_18 = arith.constant 0 : index
      %c0_19 = arith.constant 0 : index
      %78 = vector.load %arg6[%c0_18, %c0_19] : memref<128x104xf32, #tpu.memory_space<vmem>>, vector<128x104xf32>
      %79 = vector.shape_cast %78 : vector<128x104xf32> to vector<1x128x104xf32>
      %cst_20 = arith.constant dense<0.000000e+00> : vector<1xf32>
      %80 = vector.multi_reduction <add>, %79, %cst_20 [1, 2] : vector<1x128x104xf32> to vector<1xf32>
      %81 = vector.shape_cast %80 : vector<1xf32> to vector<1x1x1xf32>
      %82 = vector.extract %81[0, 0, 0] : f32 from vector<1x1x1xf32>
      %83 = vector.broadcast %82 : f32 to vector<1x1x1xf32>
      %c0_21 = arith.constant 0 : index
      %c0_22 = arith.constant 0 : index
      %c0_23 = arith.constant 0 : index
      %84 = vector.load %arg5[%c0_21, %c0_22, %c0_23] : memref<1x1x1xf32, #tpu.memory_space<vmem>>, vector<1x1x1xf32>
      tpu.vector_store %arg5[%c0_21, %c0_22, %c0_23], %83 {strides = array<i32>} : memref<1x1x1xf32, #tpu.memory_space<vmem>>, vector<1x1x1xf32>,
    } else {
    }
    return
  }
  func.func @transform_0(%arg0: i32, %arg1: i32) -> (i32, i32) {
    %c2_i32 = arith.constant 2 : i32
    %0 = arith.muli %arg0, %c2_i32 : i32
    %1 = arith.addi %0, %arg1 : i32
    %c2_i32_0 = arith.constant 2 : i32
    %2 = arith.minsi %1, %c2_i32_0 : i32
    %c0_i32 = arith.constant 0 : i32
    %c0_i32_1 = arith.constant 0 : i32
    return %2, %c0_i32 : i32, i32
  }
  func.func @transform_1(%arg0: i32, %arg1: i32) -> (i32, i32) {
    %c2_i32 = arith.constant 2 : i32
    %0 = arith.muli %arg0, %c2_i32 : i32
    %1 = arith.addi %0, %arg1 : i32
    %c2_i32_0 = arith.constant 2 : i32
    %2 = arith.minsi %1, %c2_i32_0 : i32
    %c0_i32 = arith.constant 0 : i32
    %c0_i32_1 = arith.constant 0 : i32
    return %2, %c0_i32 : i32, i32
  }
  func.func @transform_2(%arg0: i32, %arg1: i32) -> (i32, i32) {
    %c2_i32 = arith.constant 2 : i32
    %0 = arith.muli %arg0, %c2_i32 : i32
    %1 = arith.addi %0, %arg1 : i32
    %c2_i32_0 = arith.constant 2 : i32
    %2 = arith.minsi %1, %c2_i32_0 : i32
    %c0_i32 = arith.constant 0 : i32
    %c0_i32_1 = arith.constant 0 : i32
    return %2, %c0_i32 : i32, i32
  }
  func.func @transform_3(%arg0: i32, %arg1: i32) -> (i32, i32, i32) {
    %c0_i32 = arith.constant 0 : i32
    %c0_i32_0 = arith.constant 0 : i32
    %c0_i32_1 = arith.constant 0 : i32
    return %arg0, %c0_i32, %c0_i32_0 : i32, i32, i32
  }
}

</mosaic_0001>

<llo_original>
// kernel: tpu_custom_call.1
$region0: #{tpu_custom_call.1}
  #allocation0 [shape = 'u32[]', space=smem, size = 0x4, offset = 0x4, fixed_abs, tag = 'smem constant byte address 0x4 - core index']
  #allocation1 [shape = 'u32[144,128]{1,0:T(1,128)}', space=vmem, size = 0x12000, scoped, tag = 'internal scratch']
  #allocation2 [shape = 'f32[128,104]{1,0:T(8,128)}', space=vmem, size = 0x10000, scoped, tag = 'scratch operand']
  %s0 = inlined_call_operand.vmem [shape: f32[260,128], index: 0, kind: input, shape index: {}]
  %s1 = inlined_call_operand.vmem [shape: f32[260,16], index: 1, kind: input, shape index: {}]
  %s2 = inlined_call_operand.vmem [shape: f32[260,8], index: 2, kind: input, shape index: {}]
  %s3 = inlined_call_operand.vmem [shape: f32[2,1,1], index: 3, kind: output, shape index: {}]
  %s4 = sld [smem:[#allocation0]]
  $region53: #{tpu_custom_call.1} parent=0
    _
  %s6 = ssub.s32 1, %s4
  %s7 = scalar_select 0, %s6, %s4
  loop: start=0, step=1, limit=6
  $region2: #{tpu_custom_call.1} parent=0 // loop_pre_header
    _
  $region3: #{tpu_custom_call.1} parent=0 // loop_header
    %s9 = sphi 0, %s13
    %p10 = scmp.ge.s32.totalorder %s9, 6
    %s16 = sphi 0, %s28
    %s17 = sphi 0, %s24
    %s18 = sphi 0, %s16
    %s19 = sphi 0, %s17
    %s20 = sphi 0, %s18
    %s21 = sphi 0, %s19
    %s39 = sphi 0, %s41
    %s42 = sphi 0, %s39
    %s43 = sphi 0, %s42
    %s59 = sphi 0, %s43
    %s73 = sphi 0, %s75
    %s76 = sphi 0, %s73
    %s77 = sphi 0, %s76
    %s93 = sphi 0, %s77
    %s107 = sphi 0, %s109
    %s110 = sphi 0, %s107
    %s111 = sphi 0, %s110
    %s127 = sphi 0, %s111
    %s133 = sphi 0, %s135
    %s136 = sphi 0, %s133
    %s137 = sphi 0, %s136
    %s153 = sphi 0, %s137
  $region4: #{tpu_custom_call.1} parent=0 // loop_header_branch
    %12 = sbr.rel (%p10) target = $region8
  $region5: #{tpu_custom_call.1} parent=0 // loop_body
    %s14 = ssub.s32 %s9, 1
    %s15 = ssub.s32 %s9, 2
    %s22 = sadd.s32 1, %s17
    %p23 = scmp.ge.s32.totalorder %s22, 2
    %s24 = scalar_select %p23, 0, %s22
    %s25 = sadd.s32 1, %s16
    %s26 = scalar_select %p23, %s25, %s16
    %p27 = scmp.ge.s32.totalorder %s26, 2
    %s28 = scalar_select %p27, 0, %s26
    %s29 = smul.u32 %s16, 2
    %s30 = sadd.s32 %s29, %s17
    %p31 = scmp.lt.s32.totalorder %s30, 2
    %s32 = scalar_select %p31, %s30, 2
    %s33 = smul.u32 %s28, 2
    %s34 = sadd.s32 %s33, %s24
    %p35 = scmp.lt.s32.totalorder %s34, 2
    %s36 = scalar_select %p35, %s34, 2
    %s37 = ssub.s32 %s32, %s36
    %p38 = scmp.eq.s32.totalorder %s37, 0
    %s40 = sadd.s32 %s39, 1
    %s41 = scalar_select %p38, %s39, %s40
    %p44 = pneg %p38
    %p45 = scmp.eq.s32.totalorder %s9, 3
    %p46 = por %p44, %p45
    %p47 = scmp.ne.s32.totalorder %s39, %s42
    %p48 = scmp.eq.s32.totalorder %s9, 0
    %p49 = por %p47, %p48
    %p50 = scmp.ne.s32.totalorder %s39, %s42
    %p51 = scmp.eq.s32.totalorder %s14, 3
    %p52 = por %p50, %p51
    %p53 = scmp.ne.s32.totalorder %s42, %s43
    %p54 = scmp.eq.s32.totalorder %s14, 0
    %p55 = por %p53, %p54
    %p56 = scmp.ne.s32.totalorder %s42, %s43
    %p57 = scmp.eq.s32.totalorder %s15, 3
    %p58 = por %p56, %p57
    %p60 = scmp.ne.s32.totalorder %s43, %s59
    %p61 = scmp.eq.s32.totalorder %s15, 0
    %p62 = por %p60, %p61
    %s63 = smul.u32 %s16, 2
    %s64 = sadd.s32 %s63, %s17
    %p65 = scmp.lt.s32.totalorder %s64, 2
    %s66 = scalar_select %p65, %s64, 2
    %s67 = smul.u32 %s28, 2
    %s68 = sadd.s32 %s67, %s24
    %p69 = scmp.lt.s32.totalorder %s68, 2
    %s70 = scalar_select %p69, %s68, 2
    %s71 = ssub.s32 %s66, %s70
    %p72 = scmp.eq.s32.totalorder %s71, 0
    %s74 = sadd.s32 %s73, 1
    %s75 = scalar_select %p72, %s73, %s74
    %p78 = pneg %p72
    %p79 = scmp.eq.s32.totalorder %s9, 3
    %p80 = por %p78, %p79
    %p81 = scmp.ne.s32.totalorder %s73, %s76
    %p82 = scmp.eq.s32.totalorder %s9, 0
    %p83 = por %p81, %p82
    %p84 = scmp.ne.s32.totalorder %s73, %s76
    %p85 = scmp.eq.s32.totalorder %s14, 3
    %p86 = por %p84, %p85
    %p87 = scmp.ne.s32.totalorder %s76, %s77
    %p88 = scmp.eq.s32.totalorder %s14, 0
    %p89 = por %p87, %p88
    %p90 = scmp.ne.s32.totalorder %s76, %s77
    %p91 = scmp.eq.s32.totalorder %s15, 3
    %p92 = por %p90, %p91
    %p94 = scmp.ne.s32.totalorder %s77, %s93
    %p95 = scmp.eq.s32.totalorder %s15, 0
    %p96 = por %p94, %p95
    %s97 = smul.u32 %s16, 2
    %s98 = sadd.s32 %s97, %s17
    %p99 = scmp.lt.s32.totalorder %s98, 2
    %s100 = scalar_select %p99, %s98, 2
    %s101 = smul.u32 %s28, 2
    %s102 = sadd.s32 %s101, %s24
    %p103 = scmp.lt.s32.totalorder %s102, 2
    %s104 = scalar_select %p103, %s102, 2
    %s105 = ssub.s32 %s100, %s104
    %p106 = scmp.eq.s32.totalorder %s105, 0
    %s108 = sadd.s32 %s107, 1
    %s109 = scalar_select %p106, %s107, %s108
    %p112 = pneg %p106
    %p113 = scmp.eq.s32.totalorder %s9, 3
    %p114 = por %p112, %p113
    %p115 = scmp.ne.s32.totalorder %s107, %s110
    %p116 = scmp.eq.s32.totalorder %s9, 0
    %p117 = por %p115, %p116
    %p118 = scmp.ne.s32.totalorder %s107, %s110
    %p119 = scmp.eq.s32.totalorder %s14, 3
    %p120 = por %p118, %p119
    %p121 = scmp.ne.s32.totalorder %s110, %s111
    %p122 = scmp.eq.s32.totalorder %s14, 0
    %p123 = por %p121, %p122
    %p124 = scmp.ne.s32.totalorder %s110, %s111
    %p125 = scmp.eq.s32.totalorder %s15, 3
    %p126 = por %p124, %p125
    %p128 = scmp.ne.s32.totalorder %s111, %s127
    %p129 = scmp.eq.s32.totalorder %s15, 0
    %p130 = por %p128, %p129
    %s131 = ssub.s32 %s16, %s28
    %p132 = scmp.eq.s32.totalorder %s131, 0
    %s134 = sadd.s32 %s133, 1
    %s135 = scalar_select %p132, %s133, %s134
    %p138 = pneg %p132
    %p139 = scmp.eq.s32.totalorder %s9, 3
    %p140 = por %p138, %p139
    %p141 = scmp.ne.s32.totalorder %s133, %s136
    %p142 = scmp.eq.s32.totalorder %s9, 0
    %p143 = por %p141, %p142
    %p144 = scmp.ne.s32.totalorder %s133, %s136
    %p145 = scmp.eq.s32.totalorder %s14, 3
    %p146 = por %p144, %p145
    %p147 = scmp.ne.s32.totalorder %s136, %s137
    %p148 = scmp.eq.s32.totalorder %s14, 0
    %p149 = por %p147, %p148
    %p150 = scmp.ne.s32.totalorder %s136, %s137
    %p151 = scmp.eq.s32.totalorder %s15, 3
    %p152 = por %p150, %p151
    %p154 = scmp.ne.s32.totalorder %s137, %s153
    %p155 = scmp.eq.s32.totalorder %s15, 0
    %p156 = por %p154, %p155
    %p157 = scmp.le.s32.totalorder 1, %s9
    %p158 = scmp.lt.s32.totalorder %s9, 5
    %p159 = pnand %p157, %p158
    %p160 = pneg %p159
    // Predicated region
    $region9: #{tpu_custom_call.1} parent=5 // pred_check
      _
    $region10: #{tpu_custom_call.1} parent=5 // pred_check_branch
      %162 = sbr.rel (%p159) target = $region12
    $region11: #{tpu_custom_call.1} parent=5 // pred_region
      %s163 = ssub.s32 %s9, 1
    $region12: #{tpu_custom_call.1} parent=5 // pred_fallthru
      _
    %p164 = scmp.lt.s32.totalorder %s9, 4
    // Predicated region
    $region13: #{tpu_custom_call.1} parent=5 // pred_check
      %p165 = pneg %p164
    $region14: #{tpu_custom_call.1} parent=5 // pred_check_branch
      %167 = sbr.rel (%p165) target = $region16
    $region15: #{tpu_custom_call.1} parent=5 // pred_region
      // Predicated region
      $region17: #{tpu_custom_call.1} parent=15 // pred_check
        %p168 = pneg %p49
      $region18: #{tpu_custom_call.1} parent=15 // pred_check_branch
        %170 = sbr.rel (%p168) target = $region20
      $region19: #{tpu_custom_call.1} parent=15 // pred_region
        %s171 = smul.u32 %s16, 2
        %s172 = sadd.s32 %s171, %s17
        %p173 = scmp.lt.s32.totalorder %s172, 2
        %s174 = scalar_select %p173, %s172, 2
        %s175 = smul.u32 16, %s174
        %s176 = ssub.s32 33, %s175
        %p177 = scmp.lt.s32.totalorder %s176, 16
        %s178 = scalar_select %p177, %s176, 16
        %s179 = smul.u32 128, %s178
        %p180 = scmp.lt.s32.totalorder %s175, 32
        %s181 = scalar_select %p180, %s175, 32
        %s182 = smul.addr %s181, 8
        %s183 = scalar_lea.vmem %s0, %s182
        %s184 = smul.u32 %s16, 2
        %s185 = sadd.s32 %s184, %s17
        %p186 = scmp.lt.s32.totalorder %s185, 2
        %s187 = scalar_select %p186, %s185, 2
        %s188 = smul.u32 16, %s187
        %s189 = ssub.s32 33, %s188
        %p190 = scmp.lt.s32.totalorder %s189, 16
        %s191 = scalar_select %p190, %s189, 16
        %s192 = smul.u32 128, %s191
      $region20: #{tpu_custom_call.1} parent=15 // pred_fallthru
        _
      // Predicated region
      $region21: #{tpu_custom_call.1} parent=15 // pred_check
        %p193 = pneg %p83
      $region22: #{tpu_custom_call.1} parent=15 // pred_check_branch
        %195 = sbr.rel (%p193) target = $region24
      $region23: #{tpu_custom_call.1} parent=15 // pred_region
        %s196 = smul.u32 %s16, 2
        %s197 = sadd.s32 %s196, %s17
        %p198 = scmp.lt.s32.totalorder %s197, 2
        %s199 = scalar_select %p198, %s197, 2
        %s200 = smul.u32 16, %s199
        %s201 = ssub.s32 33, %s200
        %p202 = scmp.lt.s32.totalorder %s201, 16
        %s203 = scalar_select %p202, %s201, 16
        %s204 = smul.u32 128, %s203
        %p205 = scmp.lt.s32.totalorder %s200, 32
        %s206 = scalar_select %p205, %s200, 32
        %s207 = smul.addr %s206, 8
        %s208 = scalar_lea.vmem %s1, %s207
        %s209 = smul.u32 %s16, 2
        %s210 = sadd.s32 %s209, %s17
        %p211 = scmp.lt.s32.totalorder %s210, 2
        %s212 = scalar_select %p211, %s210, 2
        %s213 = smul.u32 16, %s212
        %s214 = ssub.s32 33, %s213
        %p215 = scmp.lt.s32.totalorder %s214, 16
        %s216 = scalar_select %p215, %s214, 16
        %s217 = smul.u32 128, %s216
      $region24: #{tpu_custom_call.1} parent=15 // pred_fallthru
        _
      // Predicated region
      $region25: #{tpu_custom_call.1} parent=15 // pred_check
        %p218 = pneg %p117
      $region26: #{tpu_custom_call.1} parent=15 // pred_check_branch
        %220 = sbr.rel (%p218) target = $region28
      $region27: #{tpu_custom_call.1} parent=15 // pred_region
        %s221 = smul.u32 %s16, 2
        %s222 = sadd.s32 %s221, %s17
        %p223 = scmp.lt.s32.totalorder %s222, 2
        %s224 = scalar_select %p223, %s222, 2
        %s225 = smul.u32 16, %s224
        %s226 = ssub.s32 33, %s225
        %p227 = scmp.lt.s32.totalorder %s226, 16
        %s228 = scalar_select %p227, %s226, 16
        %s229 = smul.u32 128, %s228
        %p230 = scmp.lt.s32.totalorder %s225, 32
        %s231 = scalar_select %p230, %s225, 32
        %s232 = smul.addr %s231, 8
        %s233 = scalar_lea.vmem %s2, %s232
        %s234 = smul.u32 %s16, 2
        %s235 = sadd.s32 %s234, %s17
        %p236 = scmp.lt.s32.totalorder %s235, 2
        %s237 = scalar_select %p236, %s235, 2
        %s238 = smul.u32 16, %s237
        %s239 = ssub.s32 33, %s238
        %p240 = scmp.lt.s32.totalorder %s239, 16
        %s241 = scalar_select %p240, %s239, 16
        %s242 = smul.u32 128, %s241
      $region28: #{tpu_custom_call.1} parent=15 // pred_fallthru
        _
    $region16: #{tpu_custom_call.1} parent=5 // pred_fallthru
      _
    %p243 = scmp.le.s32.totalorder 1, %s9
    %p244 = scmp.lt.s32.totalorder %s9, 5
    %p245 = pnand %p243, %p244
    %p246 = pneg %p245
    // Predicated region
    $region29: #{tpu_custom_call.1} parent=5 // pred_check
      _
    $region30: #{tpu_custom_call.1} parent=5 // pred_check_branch
      %248 = sbr.rel (%p245) target = $region32
    $region31: #{tpu_custom_call.1} parent=5 // pred_region
      %s249 = ssub.s32 %s9, 1
      %s250 = smul.u32 %s18, 2
      %s251 = sadd.s32 %s250, %s19
      %p252 = scmp.lt.s32.totalorder %s251, 2
      %s253 = scalar_select %p252, %s251, 2
      %s254 = smul.u32 16, %s253
      %s255 = ssub.s32 33, %s254
      %p256 = scmp.lt.s32.totalorder %s255, 16
      %s257 = scalar_select %p256, %s255, 16
      %s258 = smul.u32 128, %s257
      %p259 = scmp.lt.s32.totalorder %s254, 32
      %s260 = scalar_select %p259, %s254, 32
      %s261 = smul.addr %s260, 8
      %s262 = scalar_lea.vmem %s0, %s261
      %p263 = pneg %p55
      %p264 = pneg %p52
      %s265 = smul.u32 %s18, 2
      %s266 = sadd.s32 %s265, %s19
      %p267 = scmp.lt.s32.totalorder %s266, 2
      %s268 = scalar_select %p267, %s266, 2
      %s269 = smul.u32 16, %s268
      %s270 = ssub.s32 33, %s269
      %p271 = scmp.lt.s32.totalorder %s270, 16
      %s272 = scalar_select %p271, %s270, 16
      %s273 = smul.u32 128, %s272
      %p274 = scmp.lt.s32.totalorder %s269, 32
      %s275 = scalar_select %p274, %s269, 32
      %s276 = smul.addr %s275, 8
      %s277 = scalar_lea.vmem %s1, %s276
      %p278 = pneg %p89
      %p279 = pneg %p86
      %s280 = smul.u32 %s18, 2
      %s281 = sadd.s32 %s280, %s19
      %p282 = scmp.lt.s32.totalorder %s281, 2
      %s283 = scalar_select %p282, %s281, 2
      %s284 = smul.u32 16, %s283
      %s285 = ssub.s32 33, %s284
      %p286 = scmp.lt.s32.totalorder %s285, 16
      %s287 = scalar_select %p286, %s285, 16
      %s288 = smul.u32 128, %s287
      %p289 = scmp.lt.s32.totalorder %s284, 32
      %s290 = scalar_select %p289, %s284, 32
      %s291 = smul.addr %s290, 8
      %s292 = scalar_lea.vmem %s2, %s291
      %p293 = pneg %p123
      %p294 = pneg %p120
      %p295 = pneg %p149
      %p296 = pneg %p146
      %p297 = scmp.lt.s32.totalorder %s18, 1
      %s298 = scalar_select %p297, %s18, 1
      %s299 = scalar_lea.vmem %s3, %s298
      %s300 = smul.u32 %s18, 2
      %s301 = sadd.s32 %s300, %s19
      %p302 = scmp.lt.s32.totalorder %s301, 2
      %s303 = scalar_select %p302, %s301, 2
      %s304 = smul.u32 16, %s303
      %s305 = ssub.s32 33, %s304
      %p306 = scmp.lt.s32.totalorder %s305, 16
      %s307 = scalar_select %p306, %s305, 16
      %s308 = smul.u32 128, %s307
      %p309 = scmp.lt.s32.totalorder %s304, 32
      %s310 = scalar_select %p309, %s304, 32
      %s311 = smul.addr %s310, 8
      %s312 = scalar_lea.vmem %s0, %s311
      %s313 = smul.u32 %s18, 2
      %s314 = sadd.s32 %s313, %s19
      %p315 = scmp.lt.s32.totalorder %s314, 2
      %s316 = scalar_select %p315, %s314, 2
      %s317 = smul.u32 16, %s316
      %s318 = ssub.s32 33, %s317
      %p319 = scmp.lt.s32.totalorder %s318, 16
      %s320 = scalar_select %p319, %s318, 16
      %s321 = smul.u32 128, %s320
      %s322 = smul.u32 %s18, 2
      %s323 = sadd.s32 %s322, %s19
      %p324 = scmp.lt.s32.totalorder %s323, 2
      %s325 = scalar_select %p324, %s323, 2
      %s326 = smul.u32 16, %s325
      %s327 = ssub.s32 33, %s326
      %p328 = scmp.lt.s32.totalorder %s327, 16
      %s329 = scalar_select %p328, %s327, 16
      %s330 = smul.u32 128, %s329
      %p331 = scmp.lt.s32.totalorder %s326, 32
      %s332 = scalar_select %p331, %s326, 32
      %s333 = smul.addr %s332, 8
      %s334 = scalar_lea.vmem %s1, %s333
      %s335 = smul.u32 %s18, 2
      %s336 = sadd.s32 %s335, %s19
      %p337 = scmp.lt.s32.totalorder %s336, 2
      %s338 = scalar_select %p337, %s336, 2
      %s339 = smul.u32 16, %s338
      %s340 = ssub.s32 33, %s339
      %p341 = scmp.lt.s32.totalorder %s340, 16
      %s342 = scalar_select %p341, %s340, 16
      %s343 = smul.u32 128, %s342
      %s344 = smul.u32 %s18, 2
      %s345 = sadd.s32 %s344, %s19
      %p346 = scmp.lt.s32.totalorder %s345, 2
      %s347 = scalar_select %p346, %s345, 2
      %s348 = smul.u32 16, %s347
      %s349 = ssub.s32 33, %s348
      %p350 = scmp.lt.s32.totalorder %s349, 16
      %s351 = scalar_select %p350, %s349, 16
      %s352 = smul.u32 128, %s351
      %p353 = scmp.lt.s32.totalorder %s348, 32
      %s354 = scalar_select %p353, %s348, 32
      %s355 = smul.addr %s354, 8
      %s356 = scalar_lea.vmem %s2, %s355
      %s357 = smul.u32 %s18, 2
      %s358 = sadd.s32 %s357, %s19
      %p359 = scmp.lt.s32.totalorder %s358, 2
      %s360 = scalar_select %p359, %s358, 2
      %s361 = smul.u32 16, %s360
      %s362 = ssub.s32 33, %s361
      %p363 = scmp.lt.s32.totalorder %s362, 16
      %s364 = scalar_select %p363, %s362, 16
      %s365 = smul.u32 128, %s364
      %p366 = scmp.lt.s32.totalorder %s18, 1
      %s367 = scalar_select %p366, %s18, 1
      %s368 = scalar_lea.vmem %s3, %s367
      %v369 = vlaneseq
      %v370 = vand.u32 %v369, 127
      %v371 = vlaneseq
      %v372 = vshrl.u32 %v371, 7
      %v373 = vadd.s32 %v372, 8
      %v374 = vmul.u32 %v372, 8
      %v375 = vmul.u32 %v373, 8
      %vm376 = vcmp.ge.s32.totalorder %v370, %v374
      %vm377 = vcmp.ge.s32.totalorder %v370, %v375
      %v378 = vadd.s32 %v374, 8
      %v379 = vadd.s32 %v375, 8
      %vm380 = vcmp.lt.s32.totalorder %v370, %v378
      %vm381 = vcmp.lt.s32.totalorder %v370, %v379
      %vm382 = vmand %vm376, %vm380
      %vm383 = vmand %vm377, %vm381
      %v384 = vsel %vm382, 1, 0
      %v385 = vsel %vm383, 1, 0
      %v386 = vcvt.s32.f32 %v384
      %v387 = vcvt.s32.f32 %v385
      %v388 = vmul.u32 %v372, 32
      %vm389 = vcmp.ge.s32.totalorder %v370, %v388
      %v390 = vadd.s32 %v388, 32
      %vm391 = vcmp.lt.s32.totalorder %v370, %v390
      %vm392 = vmand %vm389, %vm391
      %v393 = vsel %vm392, 1, 0
      %v394 = vcvt.s32.f32 %v393
      %395 = vrot.lane.b32.xlu0 %v370, 32
      %v396 = vpop.permute.xlu0 %395
      %397 = vrot.lane.b32.xlu0 %v370, 64
      %v398 = vpop.permute.xlu0 %397
      %399 = vrot.lane.b32.xlu0 %v370, 96
      %v400 = vpop.permute.xlu0 %399
      %vm401 = vcmask 261120
      %v402 = vsel %vm401, %v370, %v396
      %vm403 = vcmask 523264
      %v404 = vsel %vm403, %v402, %v398
      %vm405 = vcmask 785408
      %v406 = vsel %vm405, %v404, %v400
      %v407 = vcvt.s32.f32 %v406
      %vm408 = vcmp.lt.s32.totalorder %v406, 8
      %v409 = vadd.s32 %v372, 16
      %v410 = vadd.s32 %v372, 24
      %v411 = vadd.s32 %v372, 32
      %v412 = vadd.s32 %v372, 40
      %v413 = vadd.s32 %v372, 48
      %v414 = vadd.s32 %v372, 56
      %v415 = vadd.s32 %v372, 64
      %v416 = vadd.s32 %v372, 72
      %v417 = vadd.s32 %v372, 80
      %v418 = vadd.s32 %v372, 88
      %v419 = vadd.s32 %v372, 96
      %v420 = vadd.s32 %v372, 104
      %v421 = vadd.s32 %v372, 112
      %v422 = vadd.s32 %v372, 120
      %s423 = smul.u32 %s18, 2
      %s424 = sadd.s32 %s423, %s19
      %s425 = smul.u32 %s424, 128
      %p426 = scmp.eq.s32.totalorder %s19, 0
      // Predicated region
      $region33: #{tpu_custom_call.1} parent=31 // pred_check
        %p427 = pneg %p426
      $region34: #{tpu_custom_call.1} parent=31 // pred_check_branch
        %429 = sbr.rel (%p427) target = $region36
      $region35: #{tpu_custom_call.1} parent=31 // pred_region
        %vm430 = vcmask 850944
        %431 = vst.msk [vmem:[#allocation2] sm:$0xff] %vm430, 0.0
        %432 = vst.msk [vmem:[#allocation2 + $0x8] sm:$0xff] %vm430, 0.0
        %433 = vst.msk [vmem:[#allocation2 + $0x10] sm:$0xff] %vm430, 0.0
        %434 = vst.msk [vmem:[#allocation2 + $0x18] sm:$0xff] %vm430, 0.0
        %435 = vst.msk [vmem:[#allocation2 + $0x20] sm:$0xff] %vm430, 0.0
        %436 = vst.msk [vmem:[#allocation2 + $0x28] sm:$0xff] %vm430, 0.0
        %437 = vst.msk [vmem:[#allocation2 + $0x30] sm:$0xff] %vm430, 0.0
        %438 = vst.msk [vmem:[#allocation2 + $0x38] sm:$0xff] %vm430, 0.0
        %439 = vst.msk [vmem:[#allocation2 + $0x40] sm:$0xff] %vm430, 0.0
        %440 = vst.msk [vmem:[#allocation2 + $0x48] sm:$0xff] %vm430, 0.0
        %441 = vst.msk [vmem:[#allocation2 + $0x50] sm:$0xff] %vm430, 0.0
        %442 = vst.msk [vmem:[#allocation2 + $0x58] sm:$0xff] %vm430, 0.0
        %443 = vst.msk [vmem:[#allocation2 + $0x60] sm:$0xff] %vm430, 0.0
        %444 = vst.msk [vmem:[#allocation2 + $0x68] sm:$0xff] %vm430, 0.0
        %445 = vst.msk [vmem:[#allocation2 + $0x70] sm:$0xff] %vm430, 0.0
        %446 = vst.msk [vmem:[#allocation2 + $0x78] sm:$0xff] %vm430, 0.0
      $region36: #{tpu_custom_call.1} parent=31 // pred_fallthru
        _
      %v447 = vld [vmem:[%s312] sm:$0xff]
      %v448 = vld [vmem:[%s312 + $0x8] sm:$0xff]
      %v449 = vld [vmem:[%s312 + $0x10] sm:$0xff]
      %v450 = vld [vmem:[%s312 + $0x18] sm:$0xff]
      %v451 = vld [vmem:[%s312 + $0x20] sm:$0xff]
      %v452 = vld [vmem:[%s312 + $0x28] sm:$0xff]
      %v453 = vld [vmem:[%s312 + $0x30] sm:$0xff]
      %v454 = vld [vmem:[%s312 + $0x38] sm:$0xff]
      %v455 = vld [vmem:[%s312 + $0x40] sm:$0xff]
      %v456 = vld [vmem:[%s312 + $0x48] sm:$0xff]
      %v457 = vld [vmem:[%s312 + $0x50] sm:$0xff]
      %v458 = vld [vmem:[%s312 + $0x58] sm:$0xff]
      %v459 = vld [vmem:[%s312 + $0x60] sm:$0xff]
      %v460 = vld [vmem:[%s312 + $0x68] sm:$0xff]
      %v461 = vld [vmem:[%s312 + $0x70] sm:$0xff]
      %v462 = vld [vmem:[%s312 + $0x78] sm:$0xff]
      %v463 = vld [vmem:[%s334] sm:$0xff]
      %v464 = vld [vmem:[%s334 + $0x8] sm:$0xff]
      %v465 = vld [vmem:[%s334 + $0x10] sm:$0xff]
      %v466 = vld [vmem:[%s334 + $0x18] sm:$0xff]
      %v467 = vld [vmem:[%s334 + $0x20] sm:$0xff]
      %v468 = vld [vmem:[%s334 + $0x28] sm:$0xff]
      %v469 = vld [vmem:[%s334 + $0x30] sm:$0xff]
      %v470 = vld [vmem:[%s334 + $0x38] sm:$0xff]
      %v471 = vld [vmem:[%s334 + $0x40] sm:$0xff]
      %v472 = vld [vmem:[%s334 + $0x48] sm:$0xff]
      %v473 = vld [vmem:[%s334 + $0x50] sm:$0xff]
      %v474 = vld [vmem:[%s334 + $0x58] sm:$0xff]
      %v475 = vld [vmem:[%s334 + $0x60] sm:$0xff]
      %v476 = vld [vmem:[%s334 + $0x68] sm:$0xff]
      %v477 = vld [vmem:[%s334 + $0x70] sm:$0xff]
      %v478 = vld [vmem:[%s334 + $0x78] sm:$0xff]
      %v479 = vld [vmem:[%s356] sm:$0xff]
      %v480 = vld [vmem:[%s356 + $0x8] sm:$0xff]
      %v481 = vld [vmem:[%s356 + $0x10] sm:$0xff]
      %v482 = vld [vmem:[%s356 + $0x18] sm:$0xff]
      %v483 = vld [vmem:[%s356 + $0x20] sm:$0xff]
      %v484 = vld [vmem:[%s356 + $0x28] sm:$0xff]
      %v485 = vld [vmem:[%s356 + $0x30] sm:$0xff]
      %v486 = vld [vmem:[%s356 + $0x38] sm:$0xff]
      %v487 = vld [vmem:[%s356 + $0x40] sm:$0xff]
      %v488 = vld [vmem:[%s356 + $0x48] sm:$0xff]
      %v489 = vld [vmem:[%s356 + $0x50] sm:$0xff]
      %v490 = vld [vmem:[%s356 + $0x58] sm:$0xff]
      %v491 = vld [vmem:[%s356 + $0x60] sm:$0xff]
      %v492 = vld [vmem:[%s356 + $0x68] sm:$0xff]
      %v493 = vld [vmem:[%s356 + $0x70] sm:$0xff]
      %v494 = vld [vmem:[%s356 + $0x78] sm:$0xff]
      %vm495 = vcmask 130048
      %v497 = vsel %vm495, %v463, 0
      %v500 = vsel %vm495, %v464, 0
      %v503 = vsel %vm495, %v465, 0
      %v506 = vsel %vm495, %v466, 0
      %v509 = vsel %vm495, %v467, 0
      %v512 = vsel %vm495, %v468, 0
      %v515 = vsel %vm495, %v469, 0
      %v518 = vsel %vm495, %v470, 0
      %v521 = vsel %vm495, %v471, 0
      %v524 = vsel %vm495, %v472, 0
      %v527 = vsel %vm495, %v473, 0
      %v530 = vsel %vm495, %v474, 0
      %v533 = vsel %vm495, %v475, 0
      %v536 = vsel %vm495, %v476, 0
      %v539 = vsel %vm495, %v477, 0
      %v542 = vsel %vm495, %v478, 0
      %544 = vmatprep.subr.mxu0 0.0
      %545 = vmatpush1.msra.mxu0 0.0
      %546 = vmatprep.subr.mxu0 0.0
      %547 = vmatpush1.msra.mxu0 0.0
      %548 = vmatprep.subr.mxu0 0.0
      %549 = vmatpush1.msra.mxu0 0.0
      %550 = vmatprep.subr.mxu0 0.0
      %551 = vmatpush1.msra.mxu0 0.0
      %552 = vmatprep.subr.mxu0 0.0
      %553 = vmatpush1.msra.mxu0 0.0
      %554 = vmatprep.subr.mxu0 0.0
      %555 = vmatpush1.msra.mxu0 0.0
      %556 = vmatprep.subr.mxu0 0.0
      %557 = vmatpush1.msra.mxu0 0.0
      %558 = vmatprep.subr.mxu0 0.0
      %559 = vmatpush1.msra.mxu0 0.0
      %560 = vmatprep.subr.mxu0 0.0
      %561 = vmatpush1.msra.mxu0 0.0
      %562 = vmatprep.subr.mxu0 0.0
      %563 = vmatpush1.msra.mxu0 0.0
      %564 = vmatprep.subr.mxu0 0.0
      %565 = vmatpush1.msra.mxu0 0.0
      %566 = vmatprep.subr.mxu0 0.0
      %567 = vmatpush1.msra.mxu0 0.0
      %568 = vmatprep.subr.mxu0 0.0
      %569 = vmatpush1.msra.mxu0 0.0
      %570 = vmatprep.subr.mxu0 0.0
      %571 = vmatpush1.msra.mxu0 0.0
      %572 = vmatprep.subr.mxu0 0.0
      %573 = vmatpush1.msra.mxu0 %v387
      %574 = vmatprep.subr.mxu0 0.0
      %575 = vmatpush1.msra.mxu0 %v386
      %576 = vmatprep.subr.mxu0 0.0
      %577 = vmatpush2.msra.mxu0 0.0
      %578 = vmatprep.subr.mxu0 0.0
      %579 = vmatpush2.msra.mxu0 0.0
      %580 = vmatprep.subr.mxu0 0.0
      %581 = vmatpush2.msra.mxu0 0.0
      %582 = vmatprep.subr.mxu0 0.0
      %583 = vmatpush2.msra.mxu0 0.0
      %584 = vmatprep.subr.mxu0 0.0
      %585 = vmatpush2.msra.mxu0 0.0
      %586 = vmatprep.subr.mxu0 0.0
      %587 = vmatpush2.msra.mxu0 0.0
      %588 = vmatprep.subr.mxu0 0.0
      %589 = vmatpush2.msra.mxu0 0.0
      %590 = vmatprep.subr.mxu0 0.0
      %591 = vmatpush2.msra.mxu0 0.0
      %592 = vmatprep.subr.mxu0 0.0
      %593 = vmatpush2.msra.mxu0 0.0
      %594 = vmatprep.subr.mxu0 0.0
      %595 = vmatpush2.msra.mxu0 0.0
      %596 = vmatprep.subr.mxu0 0.0
      %597 = vmatpush2.msra.mxu0 0.0
      %598 = vmatprep.subr.mxu0 0.0
      %599 = vmatpush2.msra.mxu0 0.0
      %600 = vmatprep.subr.mxu0 0.0
      %601 = vmatpush2.msra.mxu0 0.0
      %602 = vmatprep.subr.mxu0 0.0
      %603 = vmatpush2.msra.mxu0 0.0
      %604 = vmatprep.subr.mxu0 0.0
      %605 = vmatpush2.msra.mxu0 0.0
      %606 = vmatprep.subr.mxu0 0.0
      %607 = vmatpush2.msra.mxu0 0.0
      %608 = vmatprep.mubr.f32.mxu0 0.0
      %609 = vmatmul.mubr.f32.gmra.mxu0 %v497
      %v610 = vpop.f32.mrf.mxu0
      %v611 = vadd.f32 0.0, %v610
      %v612 = vpop.f32.mrf.mxu0
      %613 = vmatprep.mubr.f32.mxu0 0.0
      %614 = vmatmul.mubr.f32.gmra.mxu0 %v500
      %v615 = vpop.f32.mrf.mxu0
      %v616 = vadd.f32 0.0, %v615
      %v617 = vpop.f32.mrf.mxu0
      %618 = vmatprep.mubr.f32.mxu0 0.0
      %619 = vmatmul.mubr.f32.gmra.mxu0 %v503
      %v620 = vpop.f32.mrf.mxu0
      %v621 = vadd.f32 0.0, %v620
      %v622 = vpop.f32.mrf.mxu0
      %623 = vmatprep.mubr.f32.mxu0 0.0
      %624 = vmatmul.mubr.f32.gmra.mxu0 %v506
      %v625 = vpop.f32.mrf.mxu0
      %v626 = vadd.f32 0.0, %v625
      %v627 = vpop.f32.mrf.mxu0
      %628 = vmatprep.mubr.f32.mxu0 0.0
      %629 = vmatmul.mubr.f32.gmra.mxu0 %v509
      %v630 = vpop.f32.mrf.mxu0
      %v631 = vadd.f32 0.0, %v630
      %v632 = vpop.f32.mrf.mxu0
      %633 = vmatprep.mubr.f32.mxu0 0.0
      %634 = vmatmul.mubr.f32.gmra.mxu0 %v512
      %v635 = vpop.f32.mrf.mxu0
      %v636 = vadd.f32 0.0, %v635
      %v637 = vpop.f32.mrf.mxu0
      %638 = vmatprep.mubr.f32.mxu0 0.0
      %639 = vmatmul.mubr.f32.gmra.mxu0 %v515
      %v640 = vpop.f32.mrf.mxu0
      %v641 = vadd.f32 0.0, %v640
      %v642 = vpop.f32.mrf.mxu0
      %643 = vmatprep.mubr.f32.mxu0 0.0
      %644 = vmatmul.mubr.f32.gmra.mxu0 %v518
      %v645 = vpop.f32.mrf.mxu0
      %v646 = vadd.f32 0.0, %v645
      %v647 = vpop.f32.mrf.mxu0
      %648 = vmatprep.mubr.f32.mxu0 0.0
      %649 = vmatmul.mubr.f32.gmra.mxu0 %v521
      %v650 = vpop.f32.mrf.mxu0
      %v651 = vadd.f32 0.0, %v650
      %v652 = vpop.f32.mrf.mxu0
      %653 = vmatprep.mubr.f32.mxu0 0.0
      %654 = vmatmul.mubr.f32.gmra.mxu0 %v524
      %v655 = vpop.f32.mrf.mxu0
      %v656 = vadd.f32 0.0, %v655
      %v657 = vpop.f32.mrf.mxu0
      %658 = vmatprep.mubr.f32.mxu0 0.0
      %659 = vmatmul.mubr.f32.gmra.mxu0 %v527
      %v660 = vpop.f32.mrf.mxu0
      %v661 = vadd.f32 0.0, %v660
      %v662 = vpop.f32.mrf.mxu0
      %663 = vmatprep.mubr.f32.mxu0 0.0
      %664 = vmatmul.mubr.f32.gmra.mxu0 %v530
      %v665 = vpop.f32.mrf.mxu0
      %v666 = vadd.f32 0.0, %v665
      %v667 = vpop.f32.mrf.mxu0
      %668 = vmatprep.mubr.f32.mxu0 0.0
      %669 = vmatmul.mubr.f32.gmra.mxu0 %v533
      %v670 = vpop.f32.mrf.mxu0
      %v671 = vadd.f32 0.0, %v670
      %v672 = vpop.f32.mrf.mxu0
      %673 = vmatprep.mubr.f32.mxu0 0.0
      %674 = vmatmul.mubr.f32.gmra.mxu0 %v536
      %v675 = vpop.f32.mrf.mxu0
      %v676 = vadd.f32 0.0, %v675
      %v677 = vpop.f32.mrf.mxu0
      %678 = vmatprep.mubr.f32.mxu0 0.0
      %679 = vmatmul.mubr.f32.gmra.mxu0 %v539
      %v680 = vpop.f32.mrf.mxu0
      %v681 = vadd.f32 0.0, %v680
      %v682 = vpop.f32.mrf.mxu0
      %683 = vmatprep.mubr.f32.mxu0 0.0
      %684 = vmatmul.mubr.f32.gmra.mxu0 %v542
      %v685 = vpop.f32.mrf.mxu0
      %v686 = vadd.f32 0.0, %v685
      %v687 = vpop.f32.mrf.mxu0
      %688 = vdwg.mxu0
      %vm689 = vcmask 64512
      %v691 = vsel %vm689, %v479, 0
      %v694 = vsel %vm689, %v480, 0
      %v697 = vsel %vm689, %v481, 0
      %v700 = vsel %vm689, %v482, 0
      %v703 = vsel %vm689, %v483, 0
      %v706 = vsel %vm689, %v484, 0
      %v709 = vsel %vm689, %v485, 0
      %v712 = vsel %vm689, %v486, 0
      %v715 = vsel %vm689, %v487, 0
      %v718 = vsel %vm689, %v488, 0
      %v721 = vsel %vm689, %v489, 0
      %v724 = vsel %vm689, %v490, 0
      %v727 = vsel %vm689, %v491, 0
      %v730 = vsel %vm689, %v492, 0
      %v733 = vsel %vm689, %v493, 0
      %v736 = vsel %vm689, %v494, 0
      %738 = vmatprep.subr.mxu0 0.0
      %739 = vmatpush1.msra.mxu0 0.0
      %740 = vmatprep.subr.mxu0 0.0
      %741 = vmatpush1.msra.mxu0 0.0
      %742 = vmatprep.subr.mxu0 0.0
      %743 = vmatpush1.msra.mxu0 0.0
      %744 = vmatprep.subr.mxu0 0.0
      %745 = vmatpush1.msra.mxu0 0.0
      %746 = vmatprep.subr.mxu0 0.0
      %747 = vmatpush1.msra.mxu0 0.0
      %748 = vmatprep.subr.mxu0 0.0
      %749 = vmatpush1.msra.mxu0 0.0
      %750 = vmatprep.subr.mxu0 0.0
      %751 = vmatpush1.msra.mxu0 0.0
      %752 = vmatprep.subr.mxu0 0.0
      %753 = vmatpush1.msra.mxu0 0.0
      %754 = vmatprep.subr.mxu0 0.0
      %755 = vmatpush1.msra.mxu0 0.0
      %756 = vmatprep.subr.mxu0 0.0
      %757 = vmatpush1.msra.mxu0 0.0
      %758 = vmatprep.subr.mxu0 0.0
      %759 = vmatpush1.msra.mxu0 0.0
      %760 = vmatprep.subr.mxu0 0.0
      %761 = vmatpush1.msra.mxu0 0.0
      %762 = vmatprep.subr.mxu0 0.0
      %763 = vmatpush1.msra.mxu0 0.0
      %764 = vmatprep.subr.mxu0 0.0
      %765 = vmatpush1.msra.mxu0 0.0
      %766 = vmatprep.subr.mxu0 0.0
      %767 = vmatpush1.msra.mxu0 0.0
      %768 = vmatprep.subr.mxu0 0.0
      %769 = vmatpush1.msra.mxu0 %v394
      %770 = vmatprep.subr.mxu0 0.0
      %771 = vmatpush2.msra.mxu0 0.0
      %772 = vmatprep.subr.mxu0 0.0
      %773 = vmatpush2.msra.mxu0 0.0
      %774 = vmatprep.subr.mxu0 0.0
      %775 = vmatpush2.msra.mxu0 0.0
      %776 = vmatprep.subr.mxu0 0.0
      %777 = vmatpush2.msra.mxu0 0.0
      %778 = vmatprep.subr.mxu0 0.0
      %779 = vmatpush2.msra.mxu0 0.0
      %780 = vmatprep.subr.mxu0 0.0
      %781 = vmatpush2.msra.mxu0 0.0
      %782 = vmatprep.subr.mxu0 0.0
      %783 = vmatpush2.msra.mxu0 0.0
      %784 = vmatprep.subr.mxu0 0.0
      %785 = vmatpush2.msra.mxu0 0.0
      %786 = vmatprep.subr.mxu0 0.0
      %787 = vmatpush2.msra.mxu0 0.0
      %788 = vmatprep.subr.mxu0 0.0
      %789 = vmatpush2.msra.mxu0 0.0
      %790 = vmatprep.subr.mxu0 0.0
      %791 = vmatpush2.msra.mxu0 0.0
      %792 = vmatprep.subr.mxu0 0.0
      %793 = vmatpush2.msra.mxu0 0.0
      %794 = vmatprep.subr.mxu0 0.0
      %795 = vmatpush2.msra.mxu0 0.0
      %796 = vmatprep.subr.mxu0 0.0
      %797 = vmatpush2.msra.mxu0 0.0
      %798 = vmatprep.subr.mxu0 0.0
      %799 = vmatpush2.msra.mxu0 0.0
      %800 = vmatprep.subr.mxu0 0.0
      %801 = vmatpush2.msra.mxu0 0.0
      %802 = vmatprep.mubr.f32.mxu0 0.0
      %803 = vmatmul.mubr.f32.gmra.mxu0 %v691
      %v804 = vpop.f32.mrf.mxu0
      %v805 = vadd.f32 0.0, %v804
      %v806 = vpop.f32.mrf.mxu0
      %807 = vmatprep.mubr.f32.mxu0 0.0
      %808 = vmatmul.mubr.f32.gmra.mxu0 %v694
      %v809 = vpop.f32.mrf.mxu0
      %v810 = vadd.f32 0.0, %v809
      %v811 = vpop.f32.mrf.mxu0
      %812 = vmatprep.mubr.f32.mxu0 0.0
      %813 = vmatmul.mubr.f32.gmra.mxu0 %v697
      %v814 = vpop.f32.mrf.mxu0
      %v815 = vadd.f32 0.0, %v814
      %v816 = vpop.f32.mrf.mxu0
      %817 = vmatprep.mubr.f32.mxu0 0.0
      %818 = vmatmul.mubr.f32.gmra.mxu0 %v700
      %v819 = vpop.f32.mrf.mxu0
      %v820 = vadd.f32 0.0, %v819
      %v821 = vpop.f32.mrf.mxu0
      %822 = vmatprep.mubr.f32.mxu0 0.0
      %823 = vmatmul.mubr.f32.gmra.mxu0 %v703
      %v824 = vpop.f32.mrf.mxu0
      %v825 = vadd.f32 0.0, %v824
      %v826 = vpop.f32.mrf.mxu0
      %827 = vmatprep.mubr.f32.mxu0 0.0
      %828 = vmatmul.mubr.f32.gmra.mxu0 %v706
      %v829 = vpop.f32.mrf.mxu0
      %v830 = vadd.f32 0.0, %v829
      %v831 = vpop.f32.mrf.mxu0
      %832 = vmatprep.mubr.f32.mxu0 0.0
      %833 = vmatmul.mubr.f32.gmra.mxu0 %v709
      %v834 = vpop.f32.mrf.mxu0
      %v835 = vadd.f32 0.0, %v834
      %v836 = vpop.f32.mrf.mxu0
      %837 = vmatprep.mubr.f32.mxu0 0.0
      %838 = vmatmul.mubr.f32.gmra.mxu0 %v712
      %v839 = vpop.f32.mrf.mxu0
      %v840 = vadd.f32 0.0, %v839
      %v841 = vpop.f32.mrf.mxu0
      %842 = vmatprep.mubr.f32.mxu0 0.0
      %843 = vmatmul.mubr.f32.gmra.mxu0 %v715
      %v844 = vpop.f32.mrf.mxu0
      %v845 = vadd.f32 0.0, %v844
      %v846 = vpop.f32.mrf.mxu0
      %847 = vmatprep.mubr.f32.mxu0 0.0
      %848 = vmatmul.mubr.f32.gmra.mxu0 %v718
      %v849 = vpop.f32.mrf.mxu0
      %v850 = vadd.f32 0.0, %v849
      %v851 = vpop.f32.mrf.mxu0
      %852 = vmatprep.mubr.f32.mxu0 0.0
      %853 = vmatmul.mubr.f32.gmra.mxu0 %v721
      %v854 = vpop.f32.mrf.mxu0
      %v855 = vadd.f32 0.0, %v854
      %v856 = vpop.f32.mrf.mxu0
      %857 = vmatprep.mubr.f32.mxu0 0.0
      %858 = vmatmul.mubr.f32.gmra.mxu0 %v724
      %v859 = vpop.f32.mrf.mxu0
      %v860 = vadd.f32 0.0, %v859
      %v861 = vpop.f32.mrf.mxu0
      %862 = vmatprep.mubr.f32.mxu0 0.0
      %863 = vmatmul.mubr.f32.gmra.mxu0 %v727
      %v864 = vpop.f32.mrf.mxu0
      %v865 = vadd.f32 0.0, %v864
      %v866 = vpop.f32.mrf.mxu0
      %867 = vmatprep.mubr.f32.mxu0 0.0
      %868 = vmatmul.mubr.f32.gmra.mxu0 %v730
      %v869 = vpop.f32.mrf.mxu0
      %v870 = vadd.f32 0.0, %v869
      %v871 = vpop.f32.mrf.mxu0
      %872 = vmatprep.mubr.f32.mxu0 0.0
      %873 = vmatmul.mubr.f32.gmra.mxu0 %v733
      %v874 = vpop.f32.mrf.mxu0
      %v875 = vadd.f32 0.0, %v874
      %v876 = vpop.f32.mrf.mxu0
      %877 = vmatprep.mubr.f32.mxu0 0.0
      %878 = vmatmul.mubr.f32.gmra.mxu0 %v736
      %v879 = vpop.f32.mrf.mxu0
      %v880 = vadd.f32 0.0, %v879
      %v881 = vpop.f32.mrf.mxu0
      %882 = vdwg.mxu0
      %v883 = vmul.f32 %v447, %v611
      %v884 = vmul.f32 %v448, %v616
      %v885 = vmul.f32 %v449, %v621
      %v886 = vmul.f32 %v450, %v626
      %v887 = vmul.f32 %v451, %v631
      %v888 = vmul.f32 %v452, %v636
      %v889 = vmul.f32 %v453, %v641
      %v890 = vmul.f32 %v454, %v646
      %v891 = vmul.f32 %v455, %v651
      %v892 = vmul.f32 %v456, %v656
      %v893 = vmul.f32 %v457, %v661
      %v894 = vmul.f32 %v458, %v666
      %v895 = vmul.f32 %v459, %v671
      %v896 = vmul.f32 %v460, %v676
      %v897 = vmul.f32 %v461, %v681
      %v898 = vmul.f32 %v462, %v686
      %915 = vrot.lane.b32.xlu0 %v883, 120
      %v916 = vpop.permute.xlu0 %915
      %917 = vrot.lane.b32.xlu0 %v884, 120
      %v918 = vpop.permute.xlu0 %917
      %919 = vrot.lane.b32.xlu0 %v885, 120
      %v920 = vpop.permute.xlu0 %919
      %921 = vrot.lane.b32.xlu0 %v886, 120
      %v922 = vpop.permute.xlu0 %921
      %923 = vrot.lane.b32.xlu0 %v887, 120
      %v924 = vpop.permute.xlu0 %923
      %925 = vrot.lane.b32.xlu0 %v888, 120
      %v926 = vpop.permute.xlu0 %925
      %927 = vrot.lane.b32.xlu0 %v889, 120
      %v928 = vpop.permute.xlu0 %927
      %929 = vrot.lane.b32.xlu0 %v890, 120
      %v930 = vpop.permute.xlu0 %929
      %931 = vrot.lane.b32.xlu0 %v891, 120
      %v932 = vpop.permute.xlu0 %931
      %933 = vrot.lane.b32.xlu0 %v892, 120
      %v934 = vpop.permute.xlu0 %933
      %935 = vrot.lane.b32.xlu0 %v893, 120
      %v936 = vpop.permute.xlu0 %935
      %937 = vrot.lane.b32.xlu0 %v894, 120
      %v938 = vpop.permute.xlu0 %937
      %939 = vrot.lane.b32.xlu0 %v895, 120
      %v940 = vpop.permute.xlu0 %939
      %941 = vrot.lane.b32.xlu0 %v896, 120
      %v942 = vpop.permute.xlu0 %941
      %943 = vrot.lane.b32.xlu0 %v897, 120
      %v944 = vpop.permute.xlu0 %943
      %945 = vrot.lane.b32.xlu0 %v898, 120
      %v946 = vpop.permute.xlu0 %945
      %v963 = vadd.f32 %v883, %v916
      %v964 = vadd.f32 %v884, %v918
      %v965 = vadd.f32 %v885, %v920
      %v966 = vadd.f32 %v886, %v922
      %v967 = vadd.f32 %v887, %v924
      %v968 = vadd.f32 %v888, %v926
      %v969 = vadd.f32 %v889, %v928
      %v970 = vadd.f32 %v890, %v930
      %v971 = vadd.f32 %v891, %v932
      %v972 = vadd.f32 %v892, %v934
      %v973 = vadd.f32 %v893, %v936
      %v974 = vadd.f32 %v894, %v938
      %v975 = vadd.f32 %v895, %v940
      %v976 = vadd.f32 %v896, %v942
      %v977 = vadd.f32 %v897, %v944
      %v978 = vadd.f32 %v898, %v946
      %979 = vrot.lane.b32.xlu0 %v883, 112
      %v980 = vpop.permute.xlu0 %979
      %981 = vrot.lane.b32.xlu0 %v884, 112
      %v982 = vpop.permute.xlu0 %981
      %983 = vrot.lane.b32.xlu0 %v885, 112
      %v984 = vpop.permute.xlu0 %983
      %985 = vrot.lane.b32.xlu0 %v886, 112
      %v986 = vpop.permute.xlu0 %985
      %987 = vrot.lane.b32.xlu0 %v887, 112
      %v988 = vpop.permute.xlu0 %987
      %989 = vrot.lane.b32.xlu0 %v888, 112
      %v990 = vpop.permute.xlu0 %989
      %991 = vrot.lane.b32.xlu0 %v889, 112
      %v992 = vpop.permute.xlu0 %991
      %993 = vrot.lane.b32.xlu0 %v890, 112
      %v994 = vpop.permute.xlu0 %993
      %995 = vrot.lane.b32.xlu0 %v891, 112
      %v996 = vpop.permute.xlu0 %995
      %997 = vrot.lane.b32.xlu0 %v892, 112
      %v998 = vpop.permute.xlu0 %997
      %999 = vrot.lane.b32.xlu0 %v893, 112
      %v1000 = vpop.permute.xlu0 %999
      %1001 = vrot.lane.b32.xlu0 %v894, 112
      %v1002 = vpop.permute.xlu0 %1001
      %1003 = vrot.lane.b32.xlu0 %v895, 112
      %v1004 = vpop.permute.xlu0 %1003
      %1005 = vrot.lane.b32.xlu0 %v896, 112
      %v1006 = vpop.permute.xlu0 %1005
      %1007 = vrot.lane.b32.xlu0 %v897, 112
      %v1008 = vpop.permute.xlu0 %1007
      %1009 = vrot.lane.b32.xlu0 %v898, 112
      %v1010 = vpop.permute.xlu0 %1009
      %v1027 = vadd.f32 %v963, %v980
      %v1028 = vadd.f32 %v964, %v982
      %v1029 = vadd.f32 %v965, %v984
      %v1030 = vadd.f32 %v966, %v986
      %v1031 = vadd.f32 %v967, %v988
      %v1032 = vadd.f32 %v968, %v990
      %v1033 = vadd.f32 %v969, %v992
      %v1034 = vadd.f32 %v970, %v994
      %v1035 = vadd.f32 %v971, %v996
      %v1036 = vadd.f32 %v972, %v998
      %v1037 = vadd.f32 %v973, %v1000
      %v1038 = vadd.f32 %v974, %v1002
      %v1039 = vadd.f32 %v975, %v1004
      %v1040 = vadd.f32 %v976, %v1006
      %v1041 = vadd.f32 %v977, %v1008
      %v1042 = vadd.f32 %v978, %v1010
      %1043 = vrot.lane.b32.xlu0 %v883, 104
      %v1044 = vpop.permute.xlu0 %1043
      %1045 = vrot.lane.b32.xlu0 %v884, 104
      %v1046 = vpop.permute.xlu0 %1045
      %1047 = vrot.lane.b32.xlu0 %v885, 104
      %v1048 = vpop.permute.xlu0 %1047
      %1049 = vrot.lane.b32.xlu0 %v886, 104
      %v1050 = vpop.permute.xlu0 %1049
      %1051 = vrot.lane.b32.xlu0 %v887, 104
      %v1052 = vpop.permute.xlu0 %1051
      %1053 = vrot.lane.b32.xlu0 %v888, 104
      %v1054 = vpop.permute.xlu0 %1053
      %1055 = vrot.lane.b32.xlu0 %v889, 104
      %v1056 = vpop.permute.xlu0 %1055
      %1057 = vrot.lane.b32.xlu0 %v890, 104
      %v1058 = vpop.permute.xlu0 %1057
      %1059 = vrot.lane.b32.xlu0 %v891, 104
      %v1060 = vpop.permute.xlu0 %1059
      %1061 = vrot.lane.b32.xlu0 %v892, 104
      %v1062 = vpop.permute.xlu0 %1061
      %1063 = vrot.lane.b32.xlu0 %v893, 104
      %v1064 = vpop.permute.xlu0 %1063
      %1065 = vrot.lane.b32.xlu0 %v894, 104
      %v1066 = vpop.permute.xlu0 %1065
      %1067 = vrot.lane.b32.xlu0 %v895, 104
      %v1068 = vpop.permute.xlu0 %1067
      %1069 = vrot.lane.b32.xlu0 %v896, 104
      %v1070 = vpop.permute.xlu0 %1069
      %1071 = vrot.lane.b32.xlu0 %v897, 104
      %v1072 = vpop.permute.xlu0 %1071
      %1073 = vrot.lane.b32.xlu0 %v898, 104
      %v1074 = vpop.permute.xlu0 %1073
      %v1091 = vadd.f32 %v1027, %v1044
      %v1092 = vadd.f32 %v1028, %v1046
      %v1093 = vadd.f32 %v1029, %v1048
      %v1094 = vadd.f32 %v1030, %v1050
      %v1095 = vadd.f32 %v1031, %v1052
      %v1096 = vadd.f32 %v1032, %v1054
      %v1097 = vadd.f32 %v1033, %v1056
      %v1098 = vadd.f32 %v1034, %v1058
      %v1099 = vadd.f32 %v1035, %v1060
      %v1100 = vadd.f32 %v1036, %v1062
      %v1101 = vadd.f32 %v1037, %v1064
      %v1102 = vadd.f32 %v1038, %v1066
      %v1103 = vadd.f32 %v1039, %v1068
      %v1104 = vadd.f32 %v1040, %v1070
      %v1105 = vadd.f32 %v1041, %v1072
      %v1106 = vadd.f32 %v1042, %v1074
      %v1107 = vlaneseq
      %v1108 = vshrl.u32 %v1107, 7
      %v1109 = vsub.s32 0, %v1108
      %v1110 = vrot.slane %v407, %v1109
      %v1111 = vsub.f32 %v1110, %v805
      %v1112 = vsub.f32 %v1110, %v810
      %v1113 = vsub.f32 %v1110, %v815
      %v1114 = vsub.f32 %v1110, %v820
      %v1115 = vsub.f32 %v1110, %v825
      %v1116 = vsub.f32 %v1110, %v830
      %v1117 = vsub.f32 %v1110, %v835
      %v1118 = vsub.f32 %v1110, %v840
      %v1119 = vsub.f32 %v1110, %v845
      %v1120 = vsub.f32 %v1110, %v850
      %v1121 = vsub.f32 %v1110, %v855
      %v1122 = vsub.f32 %v1110, %v860
      %v1123 = vsub.f32 %v1110, %v865
      %v1124 = vsub.f32 %v1110, %v870
      %v1125 = vsub.f32 %v1110, %v875
      %v1126 = vsub.f32 %v1110, %v880
      %v1127 = vand.u32 2147483647, %v1111
      %v1128 = vand.u32 2147483647, %v1112
      %v1129 = vand.u32 2147483647, %v1113
      %v1130 = vand.u32 2147483647, %v1114
      %v1131 = vand.u32 2147483647, %v1115
      %v1132 = vand.u32 2147483647, %v1116
      %v1133 = vand.u32 2147483647, %v1117
      %v1134 = vand.u32 2147483647, %v1118
      %v1135 = vand.u32 2147483647, %v1119
      %v1136 = vand.u32 2147483647, %v1120
      %v1137 = vand.u32 2147483647, %v1121
      %v1138 = vand.u32 2147483647, %v1122
      %v1139 = vand.u32 2147483647, %v1123
      %v1140 = vand.u32 2147483647, %v1124
      %v1141 = vand.u32 2147483647, %v1125
      %v1142 = vand.u32 2147483647, %v1126
      %vm1143 = vcmp.lt.f32.partialorder %v1127, 0.5
      %vm1144 = vcmp.lt.f32.partialorder %v1128, 0.5
      %vm1145 = vcmp.lt.f32.partialorder %v1129, 0.5
      %vm1146 = vcmp.lt.f32.partialorder %v1130, 0.5
      %vm1147 = vcmp.lt.f32.partialorder %v1131, 0.5
      %vm1148 = vcmp.lt.f32.partialorder %v1132, 0.5
      %vm1149 = vcmp.lt.f32.partialorder %v1133, 0.5
      %vm1150 = vcmp.lt.f32.partialorder %v1134, 0.5
      %vm1151 = vcmp.lt.f32.partialorder %v1135, 0.5
      %vm1152 = vcmp.lt.f32.partialorder %v1136, 0.5
      %vm1153 = vcmp.lt.f32.partialorder %v1137, 0.5
      %vm1154 = vcmp.lt.f32.partialorder %v1138, 0.5
      %vm1155 = vcmp.lt.f32.partialorder %v1139, 0.5
      %vm1156 = vcmp.lt.f32.partialorder %v1140, 0.5
      %vm1157 = vcmp.lt.f32.partialorder %v1141, 0.5
      %vm1158 = vcmp.lt.f32.partialorder %v1142, 0.5
      %v1159 = vsub.f32 %v1091, 1.0
      %v1160 = vsub.f32 %v1092, 1.0
      %v1161 = vsub.f32 %v1093, 1.0
      %v1162 = vsub.f32 %v1094, 1.0
      %v1163 = vsub.f32 %v1095, 1.0
      %v1164 = vsub.f32 %v1096, 1.0
      %v1165 = vsub.f32 %v1097, 1.0
      %v1166 = vsub.f32 %v1098, 1.0
      %v1167 = vsub.f32 %v1099, 1.0
      %v1168 = vsub.f32 %v1100, 1.0
      %v1169 = vsub.f32 %v1101, 1.0
      %v1170 = vsub.f32 %v1102, 1.0
      %v1171 = vsub.f32 %v1103, 1.0
      %v1172 = vsub.f32 %v1104, 1.0
      %v1173 = vsub.f32 %v1105, 1.0
      %v1174 = vsub.f32 %v1106, 1.0
      %v1175 = vsel %vm1143, %v1159, %v1091
      %v1176 = vsel %vm1144, %v1160, %v1092
      %v1177 = vsel %vm1145, %v1161, %v1093
      %v1178 = vsel %vm1146, %v1162, %v1094
      %v1179 = vsel %vm1147, %v1163, %v1095
      %v1180 = vsel %vm1148, %v1164, %v1096
      %v1181 = vsel %vm1149, %v1165, %v1097
      %v1182 = vsel %vm1150, %v1166, %v1098
      %v1183 = vsel %vm1151, %v1167, %v1099
      %v1184 = vsel %vm1152, %v1168, %v1100
      %v1185 = vsel %vm1153, %v1169, %v1101
      %v1186 = vsel %vm1154, %v1170, %v1102
      %v1187 = vsel %vm1155, %v1171, %v1103
      %v1188 = vsel %vm1156, %v1172, %v1104
      %v1189 = vsel %vm1157, %v1173, %v1105
      %v1190 = vsel %vm1158, %v1174, %v1106
      %v1191 = vmul.f32 %v1175, %v1175
      %v1192 = vmul.f32 %v1176, %v1176
      %v1193 = vmul.f32 %v1177, %v1177
      %v1194 = vmul.f32 %v1178, %v1178
      %v1195 = vmul.f32 %v1179, %v1179
      %v1196 = vmul.f32 %v1180, %v1180
      %v1197 = vmul.f32 %v1181, %v1181
      %v1198 = vmul.f32 %v1182, %v1182
      %v1199 = vmul.f32 %v1183, %v1183
      %v1200 = vmul.f32 %v1184, %v1184
      %v1201 = vmul.f32 %v1185, %v1185
      %v1202 = vmul.f32 %v1186, %v1186
      %v1203 = vmul.f32 %v1187, %v1187
      %v1204 = vmul.f32 %v1188, %v1188
      %v1205 = vmul.f32 %v1189, %v1189
      %v1206 = vmul.f32 %v1190, %v1190
      %s1207 = sadd.s32 %s425, 0
      %v1208 = vstv %s1207
      %v1209 = vadd.s32 %v1208, %v372
      %v1210 = vadd.s32 %v1208, %v373
      %v1211 = vadd.s32 %v1208, %v409
      %v1212 = vadd.s32 %v1208, %v410
      %v1213 = vadd.s32 %v1208, %v411
      %v1214 = vadd.s32 %v1208, %v412
      %v1215 = vadd.s32 %v1208, %v413
      %v1216 = vadd.s32 %v1208, %v414
      %v1217 = vadd.s32 %v1208, %v415
      %v1218 = vadd.s32 %v1208, %v416
      %v1219 = vadd.s32 %v1208, %v417
      %v1220 = vadd.s32 %v1208, %v418
      %v1221 = vadd.s32 %v1208, %v419
      %v1222 = vadd.s32 %v1208, %v420
      %v1223 = vadd.s32 %v1208, %v421
      %v1224 = vadd.s32 %v1208, %v422
      %vm1225 = vcmp.lt.s32.totalorder %v1209, 260
      %vm1226 = vcmp.lt.s32.totalorder %v1210, 260
      %vm1227 = vcmp.lt.s32.totalorder %v1211, 260
      %vm1228 = vcmp.lt.s32.totalorder %v1212, 260
      %vm1229 = vcmp.lt.s32.totalorder %v1213, 260
      %vm1230 = vcmp.lt.s32.totalorder %v1214, 260
      %vm1231 = vcmp.lt.s32.totalorder %v1215, 260
      %vm1232 = vcmp.lt.s32.totalorder %v1216, 260
      %vm1233 = vcmp.lt.s32.totalorder %v1217, 260
      %vm1234 = vcmp.lt.s32.totalorder %v1218, 260
      %vm1235 = vcmp.lt.s32.totalorder %v1219, 260
      %vm1236 = vcmp.lt.s32.totalorder %v1220, 260
      %vm1237 = vcmp.lt.s32.totalorder %v1221, 260
      %vm1238 = vcmp.lt.s32.totalorder %v1222, 260
      %vm1239 = vcmp.lt.s32.totalorder %v1223, 260
      %vm1240 = vcmp.lt.s32.totalorder %v1224, 260
      %v1241 = vsel %vm408, 1, 0
      %v1242 = vlaneseq
      %v1243 = vshrl.u32 %v1242, 7
      %v1244 = vsub.s32 0, %v1243
      %v1245 = vrot.slane %v1241, %v1244
      %vm1246 = vcmp.eq.s32.totalorder %v1245, 1
      %v1247 = vsel %vm1225, 1, 0
      %v1248 = vsel %vm1226, 1, 0
      %v1249 = vsel %vm1227, 1, 0
      %v1250 = vsel %vm1228, 1, 0
      %v1251 = vsel %vm1229, 1, 0
      %v1252 = vsel %vm1230, 1, 0
      %v1253 = vsel %vm1231, 1, 0
      %v1254 = vsel %vm1232, 1, 0
      %v1255 = vsel %vm1233, 1, 0
      %v1256 = vsel %vm1234, 1, 0
      %v1257 = vsel %vm1235, 1, 0
      %v1258 = vsel %vm1236, 1, 0
      %v1259 = vsel %vm1237, 1, 0
      %v1260 = vsel %vm1238, 1, 0
      %v1261 = vsel %vm1239, 1, 0
      %v1262 = vsel %vm1240, 1, 0
      %vm1263 = vcmp.eq.s32.totalorder %v1247, 1
      %vm1264 = vcmp.eq.s32.totalorder %v1248, 1
      %vm1265 = vcmp.eq.s32.totalorder %v1249, 1
      %vm1266 = vcmp.eq.s32.totalorder %v1250, 1
      %vm1267 = vcmp.eq.s32.totalorder %v1251, 1
      %vm1268 = vcmp.eq.s32.totalorder %v1252, 1
      %vm1269 = vcmp.eq.s32.totalorder %v1253, 1
      %vm1270 = vcmp.eq.s32.totalorder %v1254, 1
      %vm1271 = vcmp.eq.s32.totalorder %v1255, 1
      %vm1272 = vcmp.eq.s32.totalorder %v1256, 1
      %vm1273 = vcmp.eq.s32.totalorder %v1257, 1
      %vm1274 = vcmp.eq.s32.totalorder %v1258, 1
      %vm1275 = vcmp.eq.s32.totalorder %v1259, 1
      %vm1276 = vcmp.eq.s32.totalorder %v1260, 1
      %vm1277 = vcmp.eq.s32.totalorder %v1261, 1
      %vm1278 = vcmp.eq.s32.totalorder %v1262, 1
      %vm1279 = vmand %vm1246, %vm1263
      %vm1280 = vmand %vm1246, %vm1264
      %vm1281 = vmand %vm1246, %vm1265
      %vm1282 = vmand %vm1246, %vm1266
      %vm1283 = vmand %vm1246, %vm1267
      %vm1284 = vmand %vm1246, %vm1268
      %vm1285 = vmand %vm1246, %vm1269
      %vm1286 = vmand %vm1246, %vm1270
      %vm1287 = vmand %vm1246, %vm1271
      %vm1288 = vmand %vm1246, %vm1272
      %vm1289 = vmand %vm1246, %vm1273
      %vm1290 = vmand %vm1246, %vm1274
      %vm1291 = vmand %vm1246, %vm1275
      %vm1292 = vmand %vm1246, %vm1276
      %vm1293 = vmand %vm1246, %vm1277
      %vm1294 = vmand %vm1246, %vm1278
      %v1295 = vsel %vm1279, %v1191, 0.0
      %v1296 = vsel %vm1280, %v1192, 0.0
      %v1297 = vsel %vm1281, %v1193, 0.0
      %v1298 = vsel %vm1282, %v1194, 0.0
      %v1299 = vsel %vm1283, %v1195, 0.0
      %v1300 = vsel %vm1284, %v1196, 0.0
      %v1301 = vsel %vm1285, %v1197, 0.0
      %v1302 = vsel %vm1286, %v1198, 0.0
      %v1303 = vsel %vm1287, %v1199, 0.0
      %v1304 = vsel %vm1288, %v1200, 0.0
      %v1305 = vsel %vm1289, %v1201, 0.0
      %v1306 = vsel %vm1290, %v1202, 0.0
      %v1307 = vsel %vm1291, %v1203, 0.0
      %v1308 = vsel %vm1292, %v1204, 0.0
      %v1309 = vsel %vm1293, %v1205, 0.0
      %v1310 = vsel %vm1294, %v1206, 0.0
      %v1311 = vld [vmem:[#allocation2] sm:$0xff]
      %v1312 = vld [vmem:[#allocation2 + $0x8] sm:$0xff]
      %v1313 = vld [vmem:[#allocation2 + $0x10] sm:$0xff]
      %v1314 = vld [vmem:[#allocation2 + $0x18] sm:$0xff]
      %v1315 = vld [vmem:[#allocation2 + $0x20] sm:$0xff]
      %v1316 = vld [vmem:[#allocation2 + $0x28] sm:$0xff]
      %v1317 = vld [vmem:[#allocation2 + $0x30] sm:$0xff]
      %v1318 = vld [vmem:[#allocation2 + $0x38] sm:$0xff]
      %v1319 = vld [vmem:[#allocation2 + $0x40] sm:$0xff]
      %v1320 = vld [vmem:[#allocation2 + $0x48] sm:$0xff]
      %v1321 = vld [vmem:[#allocation2 + $0x50] sm:$0xff]
      %v1322 = vld [vmem:[#allocation2 + $0x58] sm:$0xff]
      %v1323 = vld [vmem:[#allocation2 + $0x60] sm:$0xff]
      %v1324 = vld [vmem:[#allocation2 + $0x68] sm:$0xff]
      %v1325 = vld [vmem:[#allocation2 + $0x70] sm:$0xff]
      %v1326 = vld [vmem:[#allocation2 + $0x78] sm:$0xff]
      %v1327 = vadd.f32 %v1311, %v1295
      %v1328 = vadd.f32 %v1312, %v1296
      %v1329 = vadd.f32 %v1313, %v1297
      %v1330 = vadd.f32 %v1314, %v1298
      %v1331 = vadd.f32 %v1315, %v1299
      %v1332 = vadd.f32 %v1316, %v1300
      %v1333 = vadd.f32 %v1317, %v1301
      %v1334 = vadd.f32 %v1318, %v1302
      %v1335 = vadd.f32 %v1319, %v1303
      %v1336 = vadd.f32 %v1320, %v1304
      %v1337 = vadd.f32 %v1321, %v1305
      %v1338 = vadd.f32 %v1322, %v1306
      %v1339 = vadd.f32 %v1323, %v1307
      %v1340 = vadd.f32 %v1324, %v1308
      %v1341 = vadd.f32 %v1325, %v1309
      %v1342 = vadd.f32 %v1326, %v1310
      %vm1343 = vcmask 850944
      %1344 = vst.msk [vmem:[#allocation2] sm:$0xff] %vm1343, %v1327
      %1345 = vst.msk [vmem:[#allocation2 + $0x8] sm:$0xff] %vm1343, %v1328
      %1346 = vst.msk [vmem:[#allocation2 + $0x10] sm:$0xff] %vm1343, %v1329
      %1347 = vst.msk [vmem:[#allocation2 + $0x18] sm:$0xff] %vm1343, %v1330
      %1348 = vst.msk [vmem:[#allocation2 + $0x20] sm:$0xff] %vm1343, %v1331
      %1349 = vst.msk [vmem:[#allocation2 + $0x28] sm:$0xff] %vm1343, %v1332
      %1350 = vst.msk [vmem:[#allocation2 + $0x30] sm:$0xff] %vm1343, %v1333
      %1351 = vst.msk [vmem:[#allocation2 + $0x38] sm:$0xff] %vm1343, %v1334
      %1352 = vst.msk [vmem:[#allocation2 + $0x40] sm:$0xff] %vm1343, %v1335
      %1353 = vst.msk [vmem:[#allocation2 + $0x48] sm:$0xff] %vm1343, %v1336
      %1354 = vst.msk [vmem:[#allocation2 + $0x50] sm:$0xff] %vm1343, %v1337
      %1355 = vst.msk [vmem:[#allocation2 + $0x58] sm:$0xff] %vm1343, %v1338
      %1356 = vst.msk [vmem:[#allocation2 + $0x60] sm:$0xff] %vm1343, %v1339
      %1357 = vst.msk [vmem:[#allocation2 + $0x68] sm:$0xff] %vm1343, %v1340
      %1358 = vst.msk [vmem:[#allocation2 + $0x70] sm:$0xff] %vm1343, %v1341
      %1359 = vst.msk [vmem:[#allocation2 + $0x78] sm:$0xff] %vm1343, %v1342
      %p1360 = scmp.eq.s32.totalorder %s19, 1
      // Predicated region
      $region37: #{tpu_custom_call.1} parent=31 // pred_check
        %p1361 = pneg %p1360
      $region38: #{tpu_custom_call.1} parent=31 // pred_check_branch
        %1363 = sbr.rel (%p1361) target = $region40
      $region39: #{tpu_custom_call.1} parent=31 // pred_region
        %v1364 = vld [vmem:[#allocation2] sm:$0xff]
        %v1365 = vld [vmem:[#allocation2 + $0x8] sm:$0xff]
        %v1366 = vld [vmem:[#allocation2 + $0x10] sm:$0xff]
        %v1367 = vld [vmem:[#allocation2 + $0x18] sm:$0xff]
        %v1368 = vld [vmem:[#allocation2 + $0x20] sm:$0xff]
        %v1369 = vld [vmem:[#allocation2 + $0x28] sm:$0xff]
        %v1370 = vld [vmem:[#allocation2 + $0x30] sm:$0xff]
        %v1371 = vld [vmem:[#allocation2 + $0x38] sm:$0xff]
        %v1372 = vld [vmem:[#allocation2 + $0x40] sm:$0xff]
        %v1373 = vld [vmem:[#allocation2 + $0x48] sm:$0xff]
        %v1374 = vld [vmem:[#allocation2 + $0x50] sm:$0xff]
        %v1375 = vld [vmem:[#allocation2 + $0x58] sm:$0xff]
        %v1376 = vld [vmem:[#allocation2 + $0x60] sm:$0xff]
        %v1377 = vld [vmem:[#allocation2 + $0x68] sm:$0xff]
        %v1378 = vld [vmem:[#allocation2 + $0x70] sm:$0xff]
        %v1379 = vld [vmem:[#allocation2 + $0x78] sm:$0xff]
        %v1380 = vsel %vm1343, %v1364, 0.0
        %v1381 = vsel %vm1343, %v1365, 0.0
        %v1382 = vadd.f32 %v1380, %v1381
        %v1383 = vsel %vm1343, %v1366, 0.0
        %v1384 = vadd.f32 %v1382, %v1383
        %v1385 = vsel %vm1343, %v1367, 0.0
        %v1386 = vadd.f32 %v1384, %v1385
        %v1387 = vsel %vm1343, %v1368, 0.0
        %v1388 = vadd.f32 %v1386, %v1387
        %v1389 = vsel %vm1343, %v1369, 0.0
        %v1390 = vadd.f32 %v1388, %v1389
        %v1391 = vsel %vm1343, %v1370, 0.0
        %v1392 = vadd.f32 %v1390, %v1391
        %v1393 = vsel %vm1343, %v1371, 0.0
        %v1394 = vadd.f32 %v1392, %v1393
        %v1395 = vsel %vm1343, %v1372, 0.0
        %v1396 = vadd.f32 %v1394, %v1395
        %v1397 = vsel %vm1343, %v1373, 0.0
        %v1398 = vadd.f32 %v1396, %v1397
        %v1399 = vsel %vm1343, %v1374, 0.0
        %v1400 = vadd.f32 %v1398, %v1399
        %v1401 = vsel %vm1343, %v1375, 0.0
        %v1402 = vadd.f32 %v1400, %v1401
        %v1403 = vsel %vm1343, %v1376, 0.0
        %v1404 = vadd.f32 %v1402, %v1403
        %v1405 = vsel %vm1343, %v1377, 0.0
        %v1406 = vadd.f32 %v1404, %v1405
        %v1407 = vsel %vm1343, %v1378, 0.0
        %v1408 = vadd.f32 %v1406, %v1407
        %v1409 = vsel %vm1343, %v1379, 0.0
        %v1410 = vadd.f32 %v1408, %v1409
        %1411 = vadd.xlane.f32.xlu0 %v1410
        %v1412 = vpop.xlane.xlu0 %1411
        %v1413 = vrot.slane %v1412, 4
        %v1414 = vadd.f32 %v1412, %v1413
        %v1415 = vrot.slane %v1414, 2
        %v1416 = vadd.f32 %v1414, %v1415
        %v1417 = vrot.slane %v1416, 1
        %v1418 = vadd.f32 %v1416, %v1417
        %s1419 = vtos %v1418
        %v1420 = vstv %s1419
        %vm1421 = vcmask 0
        %1422 = vst.msk [vmem:[%s368] sm:$0x1] %vm1421, %v1420
      $region40: #{tpu_custom_call.1} parent=31 // pred_fallthru
        _
      %p1423 = scmp.lt.s32.totalorder %s18, 1
      %s1424 = scalar_select %p1423, %s18, 1
      %s1425 = scalar_lea.vmem %s3, %s1424
      // Predicated region
      $region41: #{tpu_custom_call.1} parent=31 // pred_check
        %p1426 = pneg %p146
      $region42: #{tpu_custom_call.1} parent=31 // pred_check_branch
        %1428 = sbr.rel (%p1426) target = $region44
      $region43: #{tpu_custom_call.1} parent=31 // pred_region
        _
      $region44: #{tpu_custom_call.1} parent=31 // pred_fallthru
        _
    $region32: #{tpu_custom_call.1} parent=5 // pred_fallthru
      _
    %p1429 = scmp.le.s32.totalorder 2, %s9
    // Predicated region
    $region45: #{tpu_custom_call.1} parent=5 // pred_check
      %p1430 = pneg %p1429
    $region46: #{tpu_custom_call.1} parent=5 // pred_check_branch
      %1432 = sbr.rel (%p1430) target = $region48
    $region47: #{tpu_custom_call.1} parent=5 // pred_region
      %s1433 = ssub.s32 %s9, 2
      // Predicated region
      $region49: #{tpu_custom_call.1} parent=47 // pred_check
        %p1434 = pneg %p152
      $region50: #{tpu_custom_call.1} parent=47 // pred_check_branch
        %1436 = sbr.rel (%p1434) target = $region52
      $region51: #{tpu_custom_call.1} parent=47 // pred_region
        %p1437 = scmp.lt.s32.totalorder %s20, 1
        %s1438 = scalar_select %p1437, %s20, 1
        %s1439 = scalar_lea.vmem %s3, %s1438
      $region52: #{tpu_custom_call.1} parent=47 // pred_fallthru
        _
    $region48: #{tpu_custom_call.1} parent=5 // pred_fallthru
      _
  $region6: #{tpu_custom_call.1} parent=0 // loop_footer
    %s13 = sadd.s32 1, %s9
  $region7: #{tpu_custom_call.1} parent=0 // loop_footer_branch
    %8 = sbr.rel target = $region3
  $region8: #{tpu_custom_call.1} parent=0 // loop_exit
    _

</llo_original>
